<compile_context>
chip_gen: v7x
topology: tpu7x:2x2x1
jax: 0.10.0
libtpu: 0.0.40
codegen_flags: <defaults>
</compile_context>

<pallas_src>
import functools

import jax
import jax.numpy as jnp
from jax import lax
from jax.experimental import pallas as pl
from jax.experimental.pallas import tpu as pltpu

_LANES = 128


def _make_kernel(n_layers, n_out, epsilon):
    """Build a kernel closed over the (static) layer count / head width / epsilon."""

    def kernel(*refs):
        it = iter(refs)
        x_ref = next(it)
        w0_ref, b0_ref = next(it), next(it)
        layer_refs = [(next(it), next(it), next(it)) for _ in range(n_layers)]
        wh_ref, bh_ref = next(it), next(it)           # fused + lane-padded heads
        out_ref = next(it)

        x = x_ref[...].astype(jnp.float32)

        # sequential[0]: Linear(n_inputs, dims[1]) + Tanh (+ Dropout(p=0) = id)
        h = jnp.tanh(
            jnp.dot(x, w0_ref[...], preferred_element_type=jnp.float32) + b0_ref[...]
        )

        # Dense skip blocks: Linear(dims[t]+dims[t+1], dims[t+2]) on cat(pre, curr),
        # realized as two matmuls on the split weight.
        pre, curr = x, h
        for (wa_ref, wb_ref, b_ref) in layer_refs:
            nxt = jnp.tanh(
                jnp.dot(pre, wa_ref[...], preferred_element_type=jnp.float32)
                + jnp.dot(curr, wb_ref[...], preferred_element_type=jnp.float32)
                + b_ref[...]
            )
            pre, curr = curr, nxt

        # Fused heads: one MXU pass over the lane-padded (d_last, 128) weight.
        # Lanes [0, n_out)         -> mu (identity)
        # Lanes [n_out, 2*n_out)   -> sigma (stable softplus + epsilon)
        # Lanes >= 2*n_out         -> zero-padded, sliced away in the wrapper.
        y = jnp.dot(curr, wh_ref[...], preferred_element_type=jnp.float32) + bh_ref[...]
        softplus = jnp.maximum(y, 0.0) + jnp.log1p(jnp.exp(-jnp.abs(y))) + epsilon
        lane = lax.broadcasted_iota(jnp.int32, y.shape, 1)
        out_ref[...] = jnp.where(lane >= n_out, softplus, y).astype(out_ref.dtype)

    return kernel


@functools.partial(jax.jit, static_argnames=("epsilon", "block_batch"))
def dense_net_pallas(x, params, epsilon=1e-4, block_batch=128):
    """Full DenseNet forward in one Pallas call, batch-tiled over a parallel grid."""
    dense = params["dense"]
    n_layers = len(dense)
    d_last, n_out = params["wm"].shape

    # --- wrapper-side head fusion + lane padding (layout plumbing, not compute) ---
    hpad = max(_LANES, pl.cdiv(2 * n_out, _LANES) * _LANES)
    w_heads = jnp.zeros((d_last, hpad), jnp.float32)
    w_heads = w_heads.at[:, :n_out].set(params["wm"])
    w_heads = w_heads.at[:, n_out:2 * n_out].set(params["ws"])
    b_heads = jnp.zeros((1, hpad), jnp.float32)
    b_heads = b_heads.at[:, :n_out].set(params["bm"])
    b_heads = b_heads.at[:, n_out:2 * n_out].set(params["bs"])

    args = [x, params["w0"], params["b0"]]
    for (wa, wb, b) in dense:
        args += [wa, wb, b]
    args += [w_heads, b_heads]

    batch, n_in = x.shape
    tb = min(block_batch, batch)
    nb = pl.cdiv(batch, tb)

    def resident(a):
        # Full-array block, same tile at every grid step -> stays VMEM-resident.
        return pl.BlockSpec(a.shape, lambda i, _nd=a.ndim: (0,) * _nd)

    in_specs = [pl.BlockSpec((tb, n_in), lambda i: (i, 0))]
    in_specs += [resident(a) for a in args[1:]]
    out_spec = pl.BlockSpec((tb, hpad), lambda i: (i, 0))

    out = pl.pallas_call(
        _make_kernel(n_layers, n_out, epsilon),
        out_shape=jax.ShapeDtypeStruct((batch, hpad), jnp.float32),
        grid=(nb,),
        in_specs=in_specs,
        out_specs=out_spec,
        # Batch tiles are independent -> megacore-parallel.  All-weights-resident
        # footprint here is ~100 KiB, far under the 32 MiB default scoped VMEM on
        # any chip; raise vmem_limit_bytes only if the model is scaled up.
        compiler_params=pltpu.CompilerParams(dimension_semantics=("parallel",)),
    )(*args)

    mu = out[:, :n_out]
    sigma = out[:, n_out:2 * n_out]
    return mu, sigma


def dense_net_ref(x, params, epsilon=1e-4):
    """Pure-JAX reference mirroring the PyTorch forward."""
    h = jnp.tanh(x @ params["w0"] + params["b0"])
    pre, curr = x, h
    for (wa, wb, b) in params["dense"]:
        nxt = jnp.tanh(pre @ wa + curr @ wb + b)
        pre, curr = curr, nxt
    mu = curr @ params["wm"] + params["bm"]
    sigma = jax.nn.softplus(curr @ params["ws"] + params["bs"]) + epsilon
    return mu, sigma


def init_params(key, n_inputs, n_outputs, n_hidden, n_layers):
    """Deterministic synthetic init (xavier-uniform-ish); weights stored (in, out)."""
    dims = (n_inputs,) + (n_hidden,) * n_layers + (n_outputs,)

    def linear(k, fan_in, fan_out):
        kw, kb = jax.random.split(k)
        lim = (6.0 / (fan_in + fan_out)) ** 0.5
        w = jax.random.uniform(kw, (fan_in, fan_out), jnp.float32, -lim, lim)
        b = jax.random.uniform(kb, (1, fan_out), jnp.float32, -0.1, 0.1)
        return w, b

    keys = jax.random.split(key, 3 + n_layers)
    params = {}
    params["w0"], params["b0"] = linear(keys[0], dims[0], dims[1])

    dense = []
    for t in range(len(dims) - 2):
        d_pre, d_curr, d_next = dims[t], dims[t + 1], dims[t + 2]
        w, b = linear(keys[1 + t], d_pre + d_curr, d_next)
        # split weight rows: first d_pre rows multiply `pre`, the rest multiply `curr`
        dense.append((w[:d_pre, :], w[d_pre:, :], b))
    params["dense"] = dense

    params["wm"], params["bm"] = linear(keys[1 + n_layers], dims[-1], n_outputs)
    params["ws"], params["bs"] = linear(keys[2 + n_layers], dims[-1], n_outputs)
    return params


if __name__ == "__main__":
    # Config consistent with DenseNet(n_inputs=8, n_outputs=8, n_hidden=32, n_layers=2,
    # init='xavier_uniform_', activation='Tanh', dropout=0.0).  batch=256 exercises
    # the 2-step parallel batch grid (tile = 128 rows).
    n_inputs, n_outputs, n_hidden, n_layers = 8, 8, 32, 2
    batch = 256
    epsilon = 1e-4

    key = jax.random.PRNGKey(0)
    k_params, k_x = jax.random.split(key)
    params = init_params(k_params, n_inputs, n_outputs, n_hidden, n_layers)
    x = jax.random.normal(k_x, (batch, n_inputs), jnp.float32)

    mu, sigma = dense_net_pallas(x, params, epsilon=epsilon)
    jax.block_until_ready((mu, sigma))

    mu_ref, sigma_ref = dense_net_ref(x, params, epsilon=epsilon)
    assert mu.shape == (batch, n_outputs) and sigma.shape == (batch, n_outputs)
    assert jnp.allclose(mu, mu_ref, atol=1e-5, rtol=1e-5)
    assert jnp.allclose(sigma, sigma_ref, atol=1e-5, rtol=1e-5)
    assert bool(jnp.all(sigma > 0.0))

    print("KERNEL_OK")
</pallas_src>

<mosaic_0001>
module attributes {stable_mosaic.version = 11 : i64} {
  func.func @kernel(%arg0: i32, %arg1: memref<128x8xf32, #tpu.memory_space<vmem>>, %arg2: memref<8x32xf32, #tpu.memory_space<vmem>>, %arg3: memref<1x32xf32, #tpu.memory_space<vmem>>, %arg4: memref<8x32xf32, #tpu.memory_space<vmem>>, %arg5: memref<32x32xf32, #tpu.memory_space<vmem>>, %arg6: memref<1x32xf32, #tpu.memory_space<vmem>>, %arg7: memref<32x8xf32, #tpu.memory_space<vmem>>, %arg8: memref<32x8xf32, #tpu.memory_space<vmem>>, %arg9: memref<1x8xf32, #tpu.memory_space<vmem>>, %arg10: memref<8x128xf32, #tpu.memory_space<vmem>>, %arg11: memref<1x128xf32, #tpu.memory_space<vmem>>, %arg12: memref<128x128xf32, #tpu.memory_space<vmem>>) attributes {dimension_semantics = [#tpu.dimension_semantics<parallel>], iteration_bounds = array<i64: 2>, scalar_prefetch = 0 : i64, scratch_operands = 0 : i64, tpu.core_type = #tpu.core_type<tc>, window_params = [{transform_indices = @transform_0, window_bounds = array<i64: 128, 8>}, {pipeline_mode = #tpu.pipeline_mode<synchronous>, transform_indices = @transform_1, window_bounds = array<i64: 8, 32>}, {pipeline_mode = #tpu.pipeline_mode<synchronous>, transform_indices = @transform_2, window_bounds = array<i64: 1, 32>}, {pipeline_mode = #tpu.pipeline_mode<synchronous>, transform_indices = @transform_3, window_bounds = array<i64: 8, 32>}, {pipeline_mode = #tpu.pipeline_mode<synchronous>, transform_indices = @transform_4, window_bounds = array<i64: 32, 32>}, {pipeline_mode = #tpu.pipeline_mode<synchronous>, transform_indices = @transform_5, window_bounds = array<i64: 1, 32>}, {pipeline_mode = #tpu.pipeline_mode<synchronous>, transform_indices = @transform_6, window_bounds = array<i64: 32, 8>}, {pipeline_mode = #tpu.pipeline_mode<synchronous>, transform_indices = @transform_7, window_bounds = array<i64: 32, 8>}, {pipeline_mode = #tpu.pipeline_mode<synchronous>, transform_indices = @transform_8, window_bounds = array<i64: 1, 8>}, {pipeline_mode = #tpu.pipeline_mode<synchronous>, transform_indices = @transform_9, window_bounds = array<i64: 8, 128>}, {pipeline_mode = #tpu.pipeline_mode<synchronous>, transform_indices = @transform_10, window_bounds = array<i64: 1, 128>}, {transform_indices = @transform_11, window_bounds = array<i64: 128, 128>}]} {
    %c0 = arith.constant 0 : index
    %c0_0 = arith.constant 0 : index
    %0 = vector.load %arg1[%c0, %c0_0] : memref<128x8xf32, #tpu.memory_space<vmem>>, vector<128x8xf32>
    %c0_1 = arith.constant 0 : index
    %c0_2 = arith.constant 0 : index
    %1 = vector.load %arg2[%c0_1, %c0_2] : memref<8x32xf32, #tpu.memory_space<vmem>>, vector<8x32xf32>
    %cst = arith.constant dense<0.000000e+00> : vector<128x32xf32>
    %2 = tpu.matmul %0, %1, %cst {dimension_numbers = #tpu.dot_dimension_numbers<[1], [0], [0], [1], [0, 0, 1, 1], [], []>} : vector<128x8xf32>, vector<8x32xf32>, vector<128x32xf32> -> vector<128x32xf32>
    %c0_3 = arith.constant 0 : index
    %c0_4 = arith.constant 0 : index
    %3 = vector.load %arg3[%c0_3, %c0_4] : memref<1x32xf32, #tpu.memory_space<vmem>>, vector<1x32xf32>
    %4 = vector.broadcast %3 : vector<1x32xf32> to vector<128x32xf32>
    %5 = arith.addf %2, %4 : vector<128x32xf32>
    %6 = math.tanh %5 : vector<128x32xf32>
    %c0_5 = arith.constant 0 : index
    %c0_6 = arith.constant 0 : index
    %7 = vector.load %arg4[%c0_5, %c0_6] : memref<8x32xf32, #tpu.memory_space<vmem>>, vector<8x32xf32>
    %cst_7 = arith.constant dense<0.000000e+00> : vector<128x32xf32>
    %8 = tpu.matmul %0, %7, %cst_7 {dimension_numbers = #tpu.dot_dimension_numbers<[1], [0], [0], [1], [0, 0, 1, 1], [], []>} : vector<128x8xf32>, vector<8x32xf32>, vector<128x32xf32> -> vector<128x32xf32>
    %c0_8 = arith.constant 0 : index
    %c0_9 = arith.constant 0 : index
    %9 = vector.load %arg5[%c0_8, %c0_9] : memref<32x32xf32, #tpu.memory_space<vmem>>, vector<32x32xf32>
    %cst_10 = arith.constant dense<0.000000e+00> : vector<128x32xf32>
    %10 = tpu.matmul %6, %9, %cst_10 {dimension_numbers = #tpu.dot_dimension_numbers<[1], [0], [0], [1], [0, 0, 1, 1], [], []>} : vector<128x32xf32>, vector<32x32xf32>, vector<128x32xf32> -> vector<128x32xf32>
    %11 = arith.addf %8, %10 : vector<128x32xf32>
    %c0_11 = arith.constant 0 : index
    %c0_12 = arith.constant 0 : index
    %12 = vector.load %arg6[%c0_11, %c0_12] : memref<1x32xf32, #tpu.memory_space<vmem>>, vector<1x32xf32>
    %13 = vector.broadcast %12 : vector<1x32xf32> to vector<128x32xf32>
    %14 = arith.addf %11, %13 : vector<128x32xf32>
    %15 = math.tanh %14 : vector<128x32xf32>
    %c0_13 = arith.constant 0 : index
    %c0_14 = arith.constant 0 : index
    %16 = vector.load %arg7[%c0_13, %c0_14] : memref<32x8xf32, #tpu.memory_space<vmem>>, vector<32x8xf32>
    %cst_15 = arith.constant dense<0.000000e+00> : vector<128x8xf32>
    %17 = tpu.matmul %6, %16, %cst_15 {dimension_numbers = #tpu.dot_dimension_numbers<[1], [0], [0], [1], [0, 0, 1, 1], [], []>} : vector<128x32xf32>, vector<32x8xf32>, vector<128x8xf32> -> vector<128x8xf32>
    %c0_16 = arith.constant 0 : index
    %c0_17 = arith.constant 0 : index
    %18 = vector.load %arg8[%c0_16, %c0_17] : memref<32x8xf32, #tpu.memory_space<vmem>>, vector<32x8xf32>
    %cst_18 = arith.constant dense<0.000000e+00> : vector<128x8xf32>
    %19 = tpu.matmul %15, %18, %cst_18 {dimension_numbers = #tpu.dot_dimension_numbers<[1], [0], [0], [1], [0, 0, 1, 1], [], []>} : vector<128x32xf32>, vector<32x8xf32>, vector<128x8xf32> -> vector<128x8xf32>
    %20 = arith.addf %17, %19 : vector<128x8xf32>
    %c0_19 = arith.constant 0 : index
    %c0_20 = arith.constant 0 : index
    %21 = vector.load %arg9[%c0_19, %c0_20] : memref<1x8xf32, #tpu.memory_space<vmem>>, vector<1x8xf32>
    %22 = vector.broadcast %21 : vector<1x8xf32> to vector<128x8xf32>
    %23 = arith.addf %20, %22 : vector<128x8xf32>
    %24 = math.tanh %23 : vector<128x8xf32>
    %c0_21 = arith.constant 0 : index
    %c0_22 = arith.constant 0 : index
    %25 = vector.load %arg10[%c0_21, %c0_22] : memref<8x128xf32, #tpu.memory_space<vmem>>, vector<8x128xf32>
    %cst_23 = arith.constant dense<0.000000e+00> : vector<128x128xf32>
    %26 = tpu.matmul %24, %25, %cst_23 {dimension_numbers = #tpu.dot_dimension_numbers<[1], [0], [0], [1], [0, 0, 1, 1], [], []>} : vector<128x8xf32>, vector<8x128xf32>, vector<128x128xf32> -> vector<128x128xf32>
    %c0_24 = arith.constant 0 : index
    %c0_25 = arith.constant 0 : index
    %27 = vector.load %arg11[%c0_24, %c0_25] : memref<1x128xf32, #tpu.memory_space<vmem>>, vector<1x128xf32>
    %28 = vector.broadcast %27 : vector<1x128xf32> to vector<128x128xf32>
    %29 = arith.addf %26, %28 : vector<128x128xf32>
    %cst_26 = arith.constant 0.000000e+00 : f32
    %30 = vector.broadcast %cst_26 : f32 to vector<128x128xf32>
    %31 = arith.maximumf %29, %30 : vector<128x128xf32>
    %32 = math.absf %29 : vector<128x128xf32>
    %cst_27 = arith.constant 0.000000e+00 : f32
    %33 = vector.broadcast %cst_27 : f32 to vector<128x128xf32>
    %34 = arith.subf %33, %32 : vector<128x128xf32>
    %35 = math.exp %34 : vector<128x128xf32>
    %36 = math.log1p %35 : vector<128x128xf32>
    %37 = arith.addf %31, %36 : vector<128x128xf32>
    %cst_28 = arith.constant 9.99999974E-5 : f32
    %38 = vector.broadcast %cst_28 : f32 to vector<128x128xf32>
    %39 = arith.addf %37, %38 : vector<128x128xf32>
    %40 = tpu.iota {dimensions = array<i32: 1>} : vector<128x128xi32>
    %c8_i32 = arith.constant 8 : i32
    %41 = vector.broadcast %c8_i32 : i32 to vector<128x128xi32>
    %42 = arith.cmpi sge, %40, %41 : vector<128x128xi32>
    %43 = arith.select %42, %39, %29 : vector<128x128xi1>, vector<128x128xf32>
    %c0_29 = arith.constant 0 : index
    %c0_30 = arith.constant 0 : index
    %44 = vector.load %arg12[%c0_29, %c0_30] : memref<128x128xf32, #tpu.memory_space<vmem>>, vector<128x128xf32>
    tpu.vector_store %arg12[%c0_29, %c0_30], %43 {strides = array<i32>} : memref<128x128xf32, #tpu.memory_space<vmem>>, vector<128x128xf32>,
    return
  }
  func.func @transform_0(%arg0: i32) -> (i32, i32) {
    %c0_i32 = arith.constant 0 : i32
    %c0_i32_0 = arith.constant 0 : i32
    return %arg0, %c0_i32 : i32, i32
  }
  func.func @transform_1(%arg0: i32) -> (i32, i32) {
    %c0_i32 = arith.constant 0 : i32
    %c0_i32_0 = arith.constant 0 : i32
    %c0_i32_1 = arith.constant 0 : i32
    return %c0_i32, %c0_i32_0 : i32, i32
  }
  func.func @transform_2(%arg0: i32) -> (i32, i32) {
    %c0_i32 = arith.constant 0 : i32
    %c0_i32_0 = arith.constant 0 : i32
    %c0_i32_1 = arith.constant 0 : i32
    return %c0_i32, %c0_i32_0 : i32, i32
  }
  func.func @transform_3(%arg0: i32) -> (i32, i32) {
    %c0_i32 = arith.constant 0 : i32
    %c0_i32_0 = arith.constant 0 : i32
    %c0_i32_1 = arith.constant 0 : i32
    return %c0_i32, %c0_i32_0 : i32, i32
  }
  func.func @transform_4(%arg0: i32) -> (i32, i32) {
    %c0_i32 = arith.constant 0 : i32
    %c0_i32_0 = arith.constant 0 : i32
    %c0_i32_1 = arith.constant 0 : i32
    return %c0_i32, %c0_i32_0 : i32, i32
  }
  func.func @transform_5(%arg0: i32) -> (i32, i32) {
    %c0_i32 = arith.constant 0 : i32
    %c0_i32_0 = arith.constant 0 : i32
    %c0_i32_1 = arith.constant 0 : i32
    return %c0_i32, %c0_i32_0 : i32, i32
  }
  func.func @transform_6(%arg0: i32) -> (i32, i32) {
    %c0_i32 = arith.constant 0 : i32
    %c0_i32_0 = arith.constant 0 : i32
    %c0_i32_1 = arith.constant 0 : i32
    return %c0_i32, %c0_i32_0 : i32, i32
  }
  func.func @transform_7(%arg0: i32) -> (i32, i32) {
    %c0_i32 = arith.constant 0 : i32
    %c0_i32_0 = arith.constant 0 : i32
    %c0_i32_1 = arith.constant 0 : i32
    return %c0_i32, %c0_i32_0 : i32, i32
  }
  func.func @transform_8(%arg0: i32) -> (i32, i32) {
    %c0_i32 = arith.constant 0 : i32
    %c0_i32_0 = arith.constant 0 : i32
    %c0_i32_1 = arith.constant 0 : i32
    return %c0_i32, %c0_i32_0 : i32, i32
  }
  func.func @transform_9(%arg0: i32) -> (i32, i32) {
    %c0_i32 = arith.constant 0 : i32
    %c0_i32_0 = arith.constant 0 : i32
    %c0_i32_1 = arith.constant 0 : i32
    return %c0_i32, %c0_i32_0 : i32, i32
  }
  func.func @transform_10(%arg0: i32) -> (i32, i32) {
    %c0_i32 = arith.constant 0 : i32
    %c0_i32_0 = arith.constant 0 : i32
    %c0_i32_1 = arith.constant 0 : i32
    return %c0_i32, %c0_i32_0 : i32, i32
  }
  func.func @transform_11(%arg0: i32) -> (i32, i32) {
    %c0_i32 = arith.constant 0 : i32
    %c0_i32_0 = arith.constant 0 : i32
    return %arg0, %c0_i32 : i32, i32
  }
}

</mosaic_0001>

<llo_original>
// kernel: dense_net_pallas.1
$region0: #{dense_net_pallas.1}
  #allocation0 [shape = 'u32[]', space=smem, size = 0x4, offset = 0x4, fixed_abs, tag = 'smem constant byte address 0x4 - core index']
  #allocation1 [shape = 'u32[144,128]{1,0:T(1,128)}', space=vmem, size = 0x12000, scoped, tag = 'internal scratch']
  %s0 = inlined_call_operand.vmem [shape: f32[256,8], index: 0, kind: input, shape index: {}]
  %s1 = inlined_call_operand.vmem [shape: f32[8,32], index: 1, kind: input, shape index: {}]
  %s2 = inlined_call_operand.vmem [shape: f32[1,32], index: 2, kind: input, shape index: {}]
  %s3 = inlined_call_operand.vmem [shape: f32[8,32], index: 3, kind: input, shape index: {}]
  %s4 = inlined_call_operand.vmem [shape: f32[32,32], index: 4, kind: input, shape index: {}]
  %s5 = inlined_call_operand.vmem [shape: f32[1,32], index: 5, kind: input, shape index: {}]
  %s6 = inlined_call_operand.vmem [shape: f32[32,8], index: 6, kind: input, shape index: {}]
  %s7 = inlined_call_operand.vmem [shape: f32[32,8], index: 7, kind: input, shape index: {}]
  %s8 = inlined_call_operand.vmem [shape: f32[1,8], index: 8, kind: input, shape index: {}]
  %s9 = inlined_call_operand.vmem [shape: f32[8,128], index: 9, kind: input, shape index: {}]
  %s10 = inlined_call_operand.vmem [shape: f32[1,128], index: 10, kind: input, shape index: {}]
  %s11 = inlined_call_operand.vmem [shape: f32[256,128], index: 11, kind: output, shape index: {}]
  %s12 = sld [smem:[#allocation0]]
  $region77: #{dense_net_pallas.1} parent=0
    _
  %s14 = ssub.s32 1, %s12
  %s15 = scalar_select 0, %s14, %s12
  loop: start=0, step=1, limit=4
  $region2: #{dense_net_pallas.1} parent=0 // loop_pre_header
    _
  $region3: #{dense_net_pallas.1} parent=0 // loop_header
    %s17 = sphi 0, %s21
    %p18 = scmp.ge.s32.totalorder %s17, 4
    %s27 = sphi 0, %s29
    %s30 = sphi 0, %s27
    %s31 = sphi 0, %s30
    %s47 = sphi 0, %s31
    %s51 = sphi 0, %s51
    %s53 = sphi 0, %s51
    %s54 = sphi 0, %s53
    %s68 = sphi 0, %s54
    %s72 = sphi 0, %s72
    %s74 = sphi 0, %s72
    %s75 = sphi 0, %s74
    %s89 = sphi 0, %s75
    %s93 = sphi 0, %s93
    %s95 = sphi 0, %s93
    %s96 = sphi 0, %s95
    %s110 = sphi 0, %s96
    %s114 = sphi 0, %s114
    %s116 = sphi 0, %s114
    %s117 = sphi 0, %s116
    %s131 = sphi 0, %s117
    %s135 = sphi 0, %s135
    %s137 = sphi 0, %s135
    %s138 = sphi 0, %s137
    %s152 = sphi 0, %s138
    %s156 = sphi 0, %s156
    %s158 = sphi 0, %s156
    %s159 = sphi 0, %s158
    %s173 = sphi 0, %s159
    %s177 = sphi 0, %s177
    %s179 = sphi 0, %s177
    %s180 = sphi 0, %s179
    %s194 = sphi 0, %s180
    %s198 = sphi 0, %s198
    %s200 = sphi 0, %s198
    %s201 = sphi 0, %s200
    %s215 = sphi 0, %s201
    %s219 = sphi 0, %s219
    %s221 = sphi 0, %s219
    %s222 = sphi 0, %s221
    %s236 = sphi 0, %s222
    %s240 = sphi 0, %s240
    %s242 = sphi 0, %s240
    %s243 = sphi 0, %s242
    %s257 = sphi 0, %s243
    %s263 = sphi 0, %s265
    %s266 = sphi 0, %s263
    %s267 = sphi 0, %s266
    %s283 = sphi 0, %s267
  $region4: #{dense_net_pallas.1} parent=0 // loop_header_branch
    %20 = sbr.rel (%p18) target = $region8
  $region5: #{dense_net_pallas.1} parent=0 // loop_body
    %s22 = ssub.s32 %s17, 1
    %s23 = ssub.s32 %s17, 2
    %s24 = sadd.s32 %s17, 1
    %s25 = ssub.s32 %s17, %s24
    %p26 = scmp.eq.s32.totalorder %s25, 0
    %s28 = sadd.s32 %s27, 1
    %s29 = scalar_select %p26, %s27, %s28
    %p32 = pneg %p26
    %p33 = scmp.eq.s32.totalorder %s17, 1
    %p34 = por %p32, %p33
    %p35 = scmp.ne.s32.totalorder %s27, %s30
    %p36 = scmp.eq.s32.totalorder %s17, 0
    %p37 = por %p35, %p36
    %p38 = scmp.ne.s32.totalorder %s27, %s30
    %p39 = scmp.eq.s32.totalorder %s22, 1
    %p40 = por %p38, %p39
    %p41 = scmp.ne.s32.totalorder %s30, %s31
    %p42 = scmp.eq.s32.totalorder %s22, 0
    %p43 = por %p41, %p42
    %p44 = scmp.ne.s32.totalorder %s30, %s31
    %p45 = scmp.eq.s32.totalorder %s23, 1
    %p46 = por %p44, %p45
    %p48 = scmp.ne.s32.totalorder %s31, %s47
    %p49 = scmp.eq.s32.totalorder %s23, 0
    %p50 = por %p48, %p49
    %s52 = sadd.s32 %s51, 1
    %p55 = scmp.eq.s32.totalorder %s17, 1
    %p56 = scmp.ne.s32.totalorder %s51, %s53
    %p57 = scmp.eq.s32.totalorder %s17, 0
    %p58 = por %p56, %p57
    %p59 = scmp.ne.s32.totalorder %s51, %s53
    %p60 = scmp.eq.s32.totalorder %s22, 1
    %p61 = por %p59, %p60
    %p62 = scmp.ne.s32.totalorder %s53, %s54
    %p63 = scmp.eq.s32.totalorder %s22, 0
    %p64 = por %p62, %p63
    %p65 = scmp.ne.s32.totalorder %s53, %s54
    %p66 = scmp.eq.s32.totalorder %s23, 1
    %p67 = por %p65, %p66
    %p69 = scmp.ne.s32.totalorder %s54, %s68
    %p70 = scmp.eq.s32.totalorder %s23, 0
    %p71 = por %p69, %p70
    %s73 = sadd.s32 %s72, 1
    %p76 = scmp.eq.s32.totalorder %s17, 1
    %p77 = scmp.ne.s32.totalorder %s72, %s74
    %p78 = scmp.eq.s32.totalorder %s17, 0
    %p79 = por %p77, %p78
    %p80 = scmp.ne.s32.totalorder %s72, %s74
    %p81 = scmp.eq.s32.totalorder %s22, 1
    %p82 = por %p80, %p81
    %p83 = scmp.ne.s32.totalorder %s74, %s75
    %p84 = scmp.eq.s32.totalorder %s22, 0
    %p85 = por %p83, %p84
    %p86 = scmp.ne.s32.totalorder %s74, %s75
    %p87 = scmp.eq.s32.totalorder %s23, 1
    %p88 = por %p86, %p87
    %p90 = scmp.ne.s32.totalorder %s75, %s89
    %p91 = scmp.eq.s32.totalorder %s23, 0
    %p92 = por %p90, %p91
    %s94 = sadd.s32 %s93, 1
    %p97 = scmp.eq.s32.totalorder %s17, 1
    %p98 = scmp.ne.s32.totalorder %s93, %s95
    %p99 = scmp.eq.s32.totalorder %s17, 0
    %p100 = por %p98, %p99
    %p101 = scmp.ne.s32.totalorder %s93, %s95
    %p102 = scmp.eq.s32.totalorder %s22, 1
    %p103 = por %p101, %p102
    %p104 = scmp.ne.s32.totalorder %s95, %s96
    %p105 = scmp.eq.s32.totalorder %s22, 0
    %p106 = por %p104, %p105
    %p107 = scmp.ne.s32.totalorder %s95, %s96
    %p108 = scmp.eq.s32.totalorder %s23, 1
    %p109 = por %p107, %p108
    %p111 = scmp.ne.s32.totalorder %s96, %s110
    %p112 = scmp.eq.s32.totalorder %s23, 0
    %p113 = por %p111, %p112
    %s115 = sadd.s32 %s114, 1
    %p118 = scmp.eq.s32.totalorder %s17, 1
    %p119 = scmp.ne.s32.totalorder %s114, %s116
    %p120 = scmp.eq.s32.totalorder %s17, 0
    %p121 = por %p119, %p120
    %p122 = scmp.ne.s32.totalorder %s114, %s116
    %p123 = scmp.eq.s32.totalorder %s22, 1
    %p124 = por %p122, %p123
    %p125 = scmp.ne.s32.totalorder %s116, %s117
    %p126 = scmp.eq.s32.totalorder %s22, 0
    %p127 = por %p125, %p126
    %p128 = scmp.ne.s32.totalorder %s116, %s117
    %p129 = scmp.eq.s32.totalorder %s23, 1
    %p130 = por %p128, %p129
    %p132 = scmp.ne.s32.totalorder %s117, %s131
    %p133 = scmp.eq.s32.totalorder %s23, 0
    %p134 = por %p132, %p133
    %s136 = sadd.s32 %s135, 1
    %p139 = scmp.eq.s32.totalorder %s17, 1
    %p140 = scmp.ne.s32.totalorder %s135, %s137
    %p141 = scmp.eq.s32.totalorder %s17, 0
    %p142 = por %p140, %p141
    %p143 = scmp.ne.s32.totalorder %s135, %s137
    %p144 = scmp.eq.s32.totalorder %s22, 1
    %p145 = por %p143, %p144
    %p146 = scmp.ne.s32.totalorder %s137, %s138
    %p147 = scmp.eq.s32.totalorder %s22, 0
    %p148 = por %p146, %p147
    %p149 = scmp.ne.s32.totalorder %s137, %s138
    %p150 = scmp.eq.s32.totalorder %s23, 1
    %p151 = por %p149, %p150
    %p153 = scmp.ne.s32.totalorder %s138, %s152
    %p154 = scmp.eq.s32.totalorder %s23, 0
    %p155 = por %p153, %p154
    %s157 = sadd.s32 %s156, 1
    %p160 = scmp.eq.s32.totalorder %s17, 1
    %p161 = scmp.ne.s32.totalorder %s156, %s158
    %p162 = scmp.eq.s32.totalorder %s17, 0
    %p163 = por %p161, %p162
    %p164 = scmp.ne.s32.totalorder %s156, %s158
    %p165 = scmp.eq.s32.totalorder %s22, 1
    %p166 = por %p164, %p165
    %p167 = scmp.ne.s32.totalorder %s158, %s159
    %p168 = scmp.eq.s32.totalorder %s22, 0
    %p169 = por %p167, %p168
    %p170 = scmp.ne.s32.totalorder %s158, %s159
    %p171 = scmp.eq.s32.totalorder %s23, 1
    %p172 = por %p170, %p171
    %p174 = scmp.ne.s32.totalorder %s159, %s173
    %p175 = scmp.eq.s32.totalorder %s23, 0
    %p176 = por %p174, %p175
    %s178 = sadd.s32 %s177, 1
    %p181 = scmp.eq.s32.totalorder %s17, 1
    %p182 = scmp.ne.s32.totalorder %s177, %s179
    %p183 = scmp.eq.s32.totalorder %s17, 0
    %p184 = por %p182, %p183
    %p185 = scmp.ne.s32.totalorder %s177, %s179
    %p186 = scmp.eq.s32.totalorder %s22, 1
    %p187 = por %p185, %p186
    %p188 = scmp.ne.s32.totalorder %s179, %s180
    %p189 = scmp.eq.s32.totalorder %s22, 0
    %p190 = por %p188, %p189
    %p191 = scmp.ne.s32.totalorder %s179, %s180
    %p192 = scmp.eq.s32.totalorder %s23, 1
    %p193 = por %p191, %p192
    %p195 = scmp.ne.s32.totalorder %s180, %s194
    %p196 = scmp.eq.s32.totalorder %s23, 0
    %p197 = por %p195, %p196
    %s199 = sadd.s32 %s198, 1
    %p202 = scmp.eq.s32.totalorder %s17, 1
    %p203 = scmp.ne.s32.totalorder %s198, %s200
    %p204 = scmp.eq.s32.totalorder %s17, 0
    %p205 = por %p203, %p204
    %p206 = scmp.ne.s32.totalorder %s198, %s200
    %p207 = scmp.eq.s32.totalorder %s22, 1
    %p208 = por %p206, %p207
    %p209 = scmp.ne.s32.totalorder %s200, %s201
    %p210 = scmp.eq.s32.totalorder %s22, 0
    %p211 = por %p209, %p210
    %p212 = scmp.ne.s32.totalorder %s200, %s201
    %p213 = scmp.eq.s32.totalorder %s23, 1
    %p214 = por %p212, %p213
    %p216 = scmp.ne.s32.totalorder %s201, %s215
    %p217 = scmp.eq.s32.totalorder %s23, 0
    %p218 = por %p216, %p217
    %s220 = sadd.s32 %s219, 1
    %p223 = scmp.eq.s32.totalorder %s17, 1
    %p224 = scmp.ne.s32.totalorder %s219, %s221
    %p225 = scmp.eq.s32.totalorder %s17, 0
    %p226 = por %p224, %p225
    %p227 = scmp.ne.s32.totalorder %s219, %s221
    %p228 = scmp.eq.s32.totalorder %s22, 1
    %p229 = por %p227, %p228
    %p230 = scmp.ne.s32.totalorder %s221, %s222
    %p231 = scmp.eq.s32.totalorder %s22, 0
    %p232 = por %p230, %p231
    %p233 = scmp.ne.s32.totalorder %s221, %s222
    %p234 = scmp.eq.s32.totalorder %s23, 1
    %p235 = por %p233, %p234
    %p237 = scmp.ne.s32.totalorder %s222, %s236
    %p238 = scmp.eq.s32.totalorder %s23, 0
    %p239 = por %p237, %p238
    %s241 = sadd.s32 %s240, 1
    %p244 = scmp.eq.s32.totalorder %s17, 1
    %p245 = scmp.ne.s32.totalorder %s240, %s242
    %p246 = scmp.eq.s32.totalorder %s17, 0
    %p247 = por %p245, %p246
    %p248 = scmp.ne.s32.totalorder %s240, %s242
    %p249 = scmp.eq.s32.totalorder %s22, 1
    %p250 = por %p248, %p249
    %p251 = scmp.ne.s32.totalorder %s242, %s243
    %p252 = scmp.eq.s32.totalorder %s22, 0
    %p253 = por %p251, %p252
    %p254 = scmp.ne.s32.totalorder %s242, %s243
    %p255 = scmp.eq.s32.totalorder %s23, 1
    %p256 = por %p254, %p255
    %p258 = scmp.ne.s32.totalorder %s243, %s257
    %p259 = scmp.eq.s32.totalorder %s23, 0
    %p260 = por %p258, %p259
    %s261 = ssub.s32 %s17, %s24
    %p262 = scmp.eq.s32.totalorder %s261, 0
    %s264 = sadd.s32 %s263, 1
    %s265 = scalar_select %p262, %s263, %s264
    %p268 = pneg %p262
    %p269 = scmp.eq.s32.totalorder %s17, 1
    %p270 = por %p268, %p269
    %p271 = scmp.ne.s32.totalorder %s263, %s266
    %p272 = scmp.eq.s32.totalorder %s17, 0
    %p273 = por %p271, %p272
    %p274 = scmp.ne.s32.totalorder %s263, %s266
    %p275 = scmp.eq.s32.totalorder %s22, 1
    %p276 = por %p274, %p275
    %p277 = scmp.ne.s32.totalorder %s266, %s267
    %p278 = scmp.eq.s32.totalorder %s22, 0
    %p279 = por %p277, %p278
    %p280 = scmp.ne.s32.totalorder %s266, %s267
    %p281 = scmp.eq.s32.totalorder %s23, 1
    %p282 = por %p280, %p281
    %p284 = scmp.ne.s32.totalorder %s267, %s283
    %p285 = scmp.eq.s32.totalorder %s23, 0
    %p286 = por %p284, %p285
    %p287 = scmp.le.s32.totalorder 1, %s17
    %p288 = scmp.lt.s32.totalorder %s17, 3
    %p289 = pnand %p287, %p288
    %p290 = pneg %p289
    // Predicated region
    $region9: #{dense_net_pallas.1} parent=5 // pred_check
      _
    $region10: #{dense_net_pallas.1} parent=5 // pred_check_branch
      %292 = sbr.rel (%p289) target = $region12
    $region11: #{dense_net_pallas.1} parent=5 // pred_region
      %s293 = ssub.s32 %s17, 1
      // Predicated region
      $region13: #{dense_net_pallas.1} parent=11 // pred_check
        %p294 = pneg %p64
      $region14: #{dense_net_pallas.1} parent=11 // pred_check_branch
        %296 = sbr.rel (%p294) target = $region16
      $region15: #{dense_net_pallas.1} parent=11 // pred_region
        _
      $region16: #{dense_net_pallas.1} parent=11 // pred_fallthru
        _
      // Predicated region
      $region17: #{dense_net_pallas.1} parent=11 // pred_check
        %p297 = pneg %p85
      $region18: #{dense_net_pallas.1} parent=11 // pred_check_branch
        %299 = sbr.rel (%p297) target = $region20
      $region19: #{dense_net_pallas.1} parent=11 // pred_region
        _
      $region20: #{dense_net_pallas.1} parent=11 // pred_fallthru
        _
      // Predicated region
      $region21: #{dense_net_pallas.1} parent=11 // pred_check
        %p300 = pneg %p106
      $region22: #{dense_net_pallas.1} parent=11 // pred_check_branch
        %302 = sbr.rel (%p300) target = $region24
      $region23: #{dense_net_pallas.1} parent=11 // pred_region
        _
      $region24: #{dense_net_pallas.1} parent=11 // pred_fallthru
        _
      // Predicated region
      $region25: #{dense_net_pallas.1} parent=11 // pred_check
        %p303 = pneg %p127
      $region26: #{dense_net_pallas.1} parent=11 // pred_check_branch
        %305 = sbr.rel (%p303) target = $region28
      $region27: #{dense_net_pallas.1} parent=11 // pred_region
        _
      $region28: #{dense_net_pallas.1} parent=11 // pred_fallthru
        _
      // Predicated region
      $region29: #{dense_net_pallas.1} parent=11 // pred_check
        %p306 = pneg %p148
      $region30: #{dense_net_pallas.1} parent=11 // pred_check_branch
        %308 = sbr.rel (%p306) target = $region32
      $region31: #{dense_net_pallas.1} parent=11 // pred_region
        _
      $region32: #{dense_net_pallas.1} parent=11 // pred_fallthru
        _
      // Predicated region
      $region33: #{dense_net_pallas.1} parent=11 // pred_check
        %p309 = pneg %p169
      $region34: #{dense_net_pallas.1} parent=11 // pred_check_branch
        %311 = sbr.rel (%p309) target = $region36
      $region35: #{dense_net_pallas.1} parent=11 // pred_region
        _
      $region36: #{dense_net_pallas.1} parent=11 // pred_fallthru
        _
      // Predicated region
      $region37: #{dense_net_pallas.1} parent=11 // pred_check
        %p312 = pneg %p190
      $region38: #{dense_net_pallas.1} parent=11 // pred_check_branch
        %314 = sbr.rel (%p312) target = $region40
      $region39: #{dense_net_pallas.1} parent=11 // pred_region
        _
      $region40: #{dense_net_pallas.1} parent=11 // pred_fallthru
        _
      // Predicated region
      $region41: #{dense_net_pallas.1} parent=11 // pred_check
        %p315 = pneg %p211
      $region42: #{dense_net_pallas.1} parent=11 // pred_check_branch
        %317 = sbr.rel (%p315) target = $region44
      $region43: #{dense_net_pallas.1} parent=11 // pred_region
        _
      $region44: #{dense_net_pallas.1} parent=11 // pred_fallthru
        _
      // Predicated region
      $region45: #{dense_net_pallas.1} parent=11 // pred_check
        %p318 = pneg %p232
      $region46: #{dense_net_pallas.1} parent=11 // pred_check_branch
        %320 = sbr.rel (%p318) target = $region48
      $region47: #{dense_net_pallas.1} parent=11 // pred_region
        _
      $region48: #{dense_net_pallas.1} parent=11 // pred_fallthru
        _
      // Predicated region
      $region49: #{dense_net_pallas.1} parent=11 // pred_check
        %p321 = pneg %p253
      $region50: #{dense_net_pallas.1} parent=11 // pred_check_branch
        %323 = sbr.rel (%p321) target = $region52
      $region51: #{dense_net_pallas.1} parent=11 // pred_region
        _
      $region52: #{dense_net_pallas.1} parent=11 // pred_fallthru
        _
    $region12: #{dense_net_pallas.1} parent=5 // pred_fallthru
      _
    %p324 = scmp.lt.s32.totalorder %s17, 2
    // Predicated region
    $region53: #{dense_net_pallas.1} parent=5 // pred_check
      %p325 = pneg %p324
    $region54: #{dense_net_pallas.1} parent=5 // pred_check_branch
      %327 = sbr.rel (%p325) target = $region56
    $region55: #{dense_net_pallas.1} parent=5 // pred_region
      // Predicated region
      $region57: #{dense_net_pallas.1} parent=55 // pred_check
        %p328 = pneg %p37
      $region58: #{dense_net_pallas.1} parent=55 // pred_check_branch
        %330 = sbr.rel (%p328) target = $region60
      $region59: #{dense_net_pallas.1} parent=55 // pred_region
        %s331 = smul.u32 16, %s17
        %p332 = scmp.lt.s32.totalorder %s331, 31
        %s333 = scalar_select %p332, %s331, 31
        %s334 = smul.addr %s333, 8
        %s335 = scalar_lea.vmem %s0, %s334
        %s336 = smul.u32 16, %s17
      $region60: #{dense_net_pallas.1} parent=55 // pred_fallthru
        _
    $region56: #{dense_net_pallas.1} parent=5 // pred_fallthru
      _
    %p337 = scmp.le.s32.totalorder 1, %s17
    %p338 = scmp.lt.s32.totalorder %s17, 3
    %p339 = pnand %p337, %p338
    %p340 = pneg %p339
    // Predicated region
    $region61: #{dense_net_pallas.1} parent=5 // pred_check
      _
    $region62: #{dense_net_pallas.1} parent=5 // pred_check_branch
      %342 = sbr.rel (%p339) target = $region64
    $region63: #{dense_net_pallas.1} parent=5 // pred_region
      %s343 = ssub.s32 %s17, 1
      %s344 = smul.u32 16, %s22
      %p345 = scmp.lt.s32.totalorder %s344, 31
      %s346 = scalar_select %p345, %s344, 31
      %s347 = smul.addr %s346, 8
      %s348 = scalar_lea.vmem %s0, %s347
      %p349 = pneg %p43
      %p350 = pneg %p40
      %p351 = pneg %p64
      %p352 = pneg %p61
      %p353 = pneg %p85
      %p354 = pneg %p82
      %p355 = pneg %p106
      %p356 = pneg %p103
      %p357 = pneg %p127
      %p358 = pneg %p124
      %p359 = pneg %p148
      %p360 = pneg %p145
      %p361 = pneg %p169
      %p362 = pneg %p166
      %p363 = pneg %p190
      %p364 = pneg %p187
      %p365 = pneg %p211
      %p366 = pneg %p208
      %p367 = pneg %p232
      %p368 = pneg %p229
      %p369 = pneg %p253
      %p370 = pneg %p250
      %p371 = pneg %p279
      %p372 = pneg %p276
      %s373 = smul.u32 16, %s22
      %p374 = scmp.lt.s32.totalorder %s373, 31
      %s375 = scalar_select %p374, %s373, 31
      %s376 = smul.addr %s375, 8
      %s377 = scalar_lea.vmem %s11, %s376
      %s378 = smul.u32 16, %s22
      %p379 = scmp.lt.s32.totalorder %s378, 31
      %s380 = scalar_select %p379, %s378, 31
      %s381 = smul.addr %s380, 8
      %s382 = scalar_lea.vmem %s0, %s381
      %s383 = smul.u32 16, %s22
      %s384 = smul.u32 16, %s22
      %p385 = scmp.lt.s32.totalorder %s384, 31
      %s386 = scalar_select %p385, %s384, 31
      %s387 = smul.addr %s386, 8
      %s388 = scalar_lea.vmem %s11, %s387
      %s389 = smul.u32 16, %s22
      %v390 = vld [vmem:[%s382] sm:$0xff]
      %v391 = vld [vmem:[%s382 + $0x8] sm:$0xff]
      %v392 = vld [vmem:[%s382 + $0x10] sm:$0xff]
      %v393 = vld [vmem:[%s382 + $0x18] sm:$0xff]
      %v394 = vld [vmem:[%s382 + $0x20] sm:$0xff]
      %v395 = vld [vmem:[%s382 + $0x28] sm:$0xff]
      %v396 = vld [vmem:[%s382 + $0x30] sm:$0xff]
      %v397 = vld [vmem:[%s382 + $0x38] sm:$0xff]
      %v398 = vld [vmem:[%s382 + $0x40] sm:$0xff]
      %v399 = vld [vmem:[%s382 + $0x48] sm:$0xff]
      %v400 = vld [vmem:[%s382 + $0x50] sm:$0xff]
      %v401 = vld [vmem:[%s382 + $0x58] sm:$0xff]
      %v402 = vld [vmem:[%s382 + $0x60] sm:$0xff]
      %v403 = vld [vmem:[%s382 + $0x68] sm:$0xff]
      %v404 = vld [vmem:[%s382 + $0x70] sm:$0xff]
      %v405 = vld [vmem:[%s382 + $0x78] sm:$0xff]
      %v406 = vld [vmem:[%s1] sm:$0xff]
      %v407 = vld [vmem:[%s2] sm:$0x1]
      %v409 = vlaneseq
      %v410 = vshrl.u32 %v409, 7
      %v411 = vsub.s32 0, %v410
      %v412 = vrot.slane %v407, %v411
      %vm414 = vcmask 64512
      %v416 = vsel %vm414, %v390, 0
      %v419 = vsel %vm414, %v391, 0
      %v422 = vsel %vm414, %v392, 0
      %v425 = vsel %vm414, %v393, 0
      %v428 = vsel %vm414, %v394, 0
      %v431 = vsel %vm414, %v395, 0
      %v434 = vsel %vm414, %v396, 0
      %v437 = vsel %vm414, %v397, 0
      %v440 = vsel %vm414, %v398, 0
      %v443 = vsel %vm414, %v399, 0
      %v446 = vsel %vm414, %v400, 0
      %v449 = vsel %vm414, %v401, 0
      %v452 = vsel %vm414, %v402, 0
      %v455 = vsel %vm414, %v403, 0
      %v458 = vsel %vm414, %v404, 0
      %v461 = vsel %vm414, %v405, 0
      %463 = vmatprep.subr.mxu0 0.0
      %464 = vmatpush1.msra.mxu0 %v406
      %465 = vmatprep.subr.mxu0 0.0
      %466 = vmatpush1.msra.mxu0 0.0
      %467 = vmatprep.subr.mxu0 0.0
      %468 = vmatpush1.msra.mxu0 0.0
      %469 = vmatprep.subr.mxu0 0.0
      %470 = vmatpush1.msra.mxu0 0.0
      %471 = vmatprep.subr.mxu0 0.0
      %472 = vmatpush1.msra.mxu0 0.0
      %473 = vmatprep.subr.mxu0 0.0
      %474 = vmatpush1.msra.mxu0 0.0
      %475 = vmatprep.subr.mxu0 0.0
      %476 = vmatpush1.msra.mxu0 0.0
      %477 = vmatprep.subr.mxu0 0.0
      %478 = vmatpush1.msra.mxu0 0.0
      %479 = vmatprep.subr.mxu0 0.0
      %480 = vmatpush1.msra.mxu0 0.0
      %481 = vmatprep.subr.mxu0 0.0
      %482 = vmatpush1.msra.mxu0 0.0
      %483 = vmatprep.subr.mxu0 0.0
      %484 = vmatpush1.msra.mxu0 0.0
      %485 = vmatprep.subr.mxu0 0.0
      %486 = vmatpush1.msra.mxu0 0.0
      %487 = vmatprep.subr.mxu0 0.0
      %488 = vmatpush1.msra.mxu0 0.0
      %489 = vmatprep.subr.mxu0 0.0
      %490 = vmatpush1.msra.mxu0 0.0
      %491 = vmatprep.subr.mxu0 0.0
      %492 = vmatpush1.msra.mxu0 0.0
      %493 = vmatprep.subr.mxu0 0.0
      %494 = vmatpush1.msra.mxu0 0.0
      %495 = vmatprep.subr.mxu0 0.0
      %496 = vmatpush1.msra.mxu0 0.0
      %497 = vmatprep.subr.mxu0 0.0
      %498 = vmatpush1.msra.mxu0 0.0
      %499 = vmatprep.subr.mxu0 0.0
      %500 = vmatpush1.msra.mxu0 0.0
      %501 = vmatprep.subr.mxu0 0.0
      %502 = vmatpush1.msra.mxu0 0.0
      %503 = vmatprep.subr.mxu0 0.0
      %504 = vmatpush1.msra.mxu0 0.0
      %505 = vmatprep.subr.mxu0 0.0
      %506 = vmatpush1.msra.mxu0 0.0
      %507 = vmatprep.subr.mxu0 0.0
      %508 = vmatpush1.msra.mxu0 0.0
      %509 = vmatprep.subr.mxu0 0.0
      %510 = vmatpush1.msra.mxu0 0.0
      %511 = vmatprep.subr.mxu0 0.0
      %512 = vmatpush1.msra.mxu0 0.0
      %513 = vmatprep.subr.mxu0 0.0
      %514 = vmatpush1.msra.mxu0 0.0
      %515 = vmatprep.subr.mxu0 0.0
      %516 = vmatpush1.msra.mxu0 0.0
      %517 = vmatprep.subr.mxu0 0.0
      %518 = vmatpush1.msra.mxu0 0.0
      %519 = vmatprep.subr.mxu0 0.0
      %520 = vmatpush1.msra.mxu0 0.0
      %521 = vmatprep.subr.mxu0 0.0
      %522 = vmatpush1.msra.mxu0 0.0
      %523 = vmatprep.subr.mxu0 0.0
      %524 = vmatpush1.msra.mxu0 0.0
      %525 = vmatprep.subr.mxu0 0.0
      %526 = vmatpush1.msra.mxu0 0.0
      %527 = vmatprep.mubr.f32.mxu0 0.0
      %528 = vmatmul.mubr.f32.gmra.mrb[0].mxu0 %v416
      %v529 = vpop.f32.mrb[0].mxu0
      %v530 = vadd.f32 %v412, %v529
      %v531 = vpop.f32.mrb[0].mxu0
      %532 = vmatprep.mubr.f32.mxu0 0.0
      %533 = vmatmul.mubr.f32.gmra.mrb[0].mxu0 %v419
      %v534 = vpop.f32.mrb[0].mxu0
      %v535 = vadd.f32 %v412, %v534
      %v536 = vpop.f32.mrb[0].mxu0
      %537 = vmatprep.mubr.f32.mxu0 0.0
      %538 = vmatmul.mubr.f32.gmra.mrb[0].mxu0 %v422
      %v539 = vpop.f32.mrb[0].mxu0
      %v540 = vadd.f32 %v412, %v539
      %v541 = vpop.f32.mrb[0].mxu0
      %542 = vmatprep.mubr.f32.mxu0 0.0
      %543 = vmatmul.mubr.f32.gmra.mrb[0].mxu0 %v425
      %v544 = vpop.f32.mrb[0].mxu0
      %v545 = vadd.f32 %v412, %v544
      %v546 = vpop.f32.mrb[0].mxu0
      %547 = vmatprep.mubr.f32.mxu0 0.0
      %548 = vmatmul.mubr.f32.gmra.mrb[0].mxu0 %v428
      %v549 = vpop.f32.mrb[0].mxu0
      %v550 = vadd.f32 %v412, %v549
      %v551 = vpop.f32.mrb[0].mxu0
      %552 = vmatprep.mubr.f32.mxu0 0.0
      %553 = vmatmul.mubr.f32.gmra.mrb[0].mxu0 %v431
      %v554 = vpop.f32.mrb[0].mxu0
      %v555 = vadd.f32 %v412, %v554
      %v556 = vpop.f32.mrb[0].mxu0
      %557 = vmatprep.mubr.f32.mxu0 0.0
      %558 = vmatmul.mubr.f32.gmra.mrb[0].mxu0 %v434
      %v559 = vpop.f32.mrb[0].mxu0
      %v560 = vadd.f32 %v412, %v559
      %v561 = vpop.f32.mrb[0].mxu0
      %562 = vmatprep.mubr.f32.mxu0 0.0
      %563 = vmatmul.mubr.f32.gmra.mrb[0].mxu0 %v437
      %v564 = vpop.f32.mrb[0].mxu0
      %v565 = vadd.f32 %v412, %v564
      %v566 = vpop.f32.mrb[0].mxu0
      %567 = vmatprep.mubr.f32.mxu0 0.0
      %568 = vmatmul.mubr.f32.gmra.mrb[0].mxu0 %v440
      %v569 = vpop.f32.mrb[0].mxu0
      %v570 = vadd.f32 %v412, %v569
      %v571 = vpop.f32.mrb[0].mxu0
      %572 = vmatprep.mubr.f32.mxu0 0.0
      %573 = vmatmul.mubr.f32.gmra.mrb[0].mxu0 %v443
      %v574 = vpop.f32.mrb[0].mxu0
      %v575 = vadd.f32 %v412, %v574
      %v576 = vpop.f32.mrb[0].mxu0
      %577 = vmatprep.mubr.f32.mxu0 0.0
      %578 = vmatmul.mubr.f32.gmra.mrb[0].mxu0 %v446
      %v579 = vpop.f32.mrb[0].mxu0
      %v580 = vadd.f32 %v412, %v579
      %v581 = vpop.f32.mrb[0].mxu0
      %582 = vmatprep.mubr.f32.mxu0 0.0
      %583 = vmatmul.mubr.f32.gmra.mrb[0].mxu0 %v449
      %v584 = vpop.f32.mrb[0].mxu0
      %v585 = vadd.f32 %v412, %v584
      %v586 = vpop.f32.mrb[0].mxu0
      %587 = vmatprep.mubr.f32.mxu0 0.0
      %588 = vmatmul.mubr.f32.gmra.mrb[0].mxu0 %v452
      %v589 = vpop.f32.mrb[0].mxu0
      %v590 = vadd.f32 %v412, %v589
      %v591 = vpop.f32.mrb[0].mxu0
      %592 = vmatprep.mubr.f32.mxu0 0.0
      %593 = vmatmul.mubr.f32.gmra.mrb[0].mxu0 %v455
      %v594 = vpop.f32.mrb[0].mxu0
      %v595 = vadd.f32 %v412, %v594
      %v596 = vpop.f32.mrb[0].mxu0
      %597 = vmatprep.mubr.f32.mxu0 0.0
      %598 = vmatmul.mubr.f32.gmra.mrb[0].mxu0 %v458
      %v599 = vpop.f32.mrb[0].mxu0
      %v600 = vadd.f32 %v412, %v599
      %v601 = vpop.f32.mrb[0].mxu0
      %602 = vmatprep.mubr.f32.mxu0 0.0
      %603 = vmatmul.mubr.f32.gmra.mrb[0].mxu0 %v461
      %v604 = vpop.f32.mrb[0].mxu0
      %v605 = vadd.f32 %v412, %v604
      %v606 = vpop.f32.mrb[0].mxu0
      %607 = vdwg.mxu0
      %v608 = vtanh.pop %v530
      %v609 = vtanh.pop %v535
      %v610 = vtanh.pop %v540
      %v611 = vtanh.pop %v545
      %v612 = vtanh.pop %v550
      %v613 = vtanh.pop %v555
      %v614 = vtanh.pop %v560
      %v615 = vtanh.pop %v565
      %v616 = vtanh.pop %v570
      %v617 = vtanh.pop %v575
      %v618 = vtanh.pop %v580
      %v619 = vtanh.pop %v585
      %v620 = vtanh.pop %v590
      %v621 = vtanh.pop %v595
      %v622 = vtanh.pop %v600
      %v623 = vtanh.pop %v605
      %v624 = vld [vmem:[%s3] sm:$0xff]
      %v625 = vld [vmem:[%s4] sm:$0xff]
      %v626 = vld [vmem:[%s4 + $0x8] sm:$0xff]
      %v627 = vld [vmem:[%s4 + $0x10] sm:$0xff]
      %v628 = vld [vmem:[%s4 + $0x18] sm:$0xff]
      %vm629 = vcmask 261120
      %v631 = vsel %vm629, %v608, 0
      %v634 = vsel %vm629, %v609, 0
      %v637 = vsel %vm629, %v610, 0
      %v640 = vsel %vm629, %v611, 0
      %v643 = vsel %vm629, %v612, 0
      %v646 = vsel %vm629, %v613, 0
      %v649 = vsel %vm629, %v614, 0
      %v652 = vsel %vm629, %v615, 0
      %v655 = vsel %vm629, %v616, 0
      %v658 = vsel %vm629, %v617, 0
      %v661 = vsel %vm629, %v618, 0
      %v664 = vsel %vm629, %v619, 0
      %v667 = vsel %vm629, %v620, 0
      %v670 = vsel %vm629, %v621, 0
      %v673 = vsel %vm629, %v622, 0
      %v676 = vsel %vm629, %v623, 0
      %678 = vmatprep.subr.mxu0 0.0
      %679 = vmatpush1.msra.mxu0 %v625
      %680 = vmatprep.subr.mxu0 0.0
      %681 = vmatpush1.msra.mxu0 %v626
      %682 = vmatprep.subr.mxu0 0.0
      %683 = vmatpush1.msra.mxu0 %v627
      %684 = vmatprep.subr.mxu0 0.0
      %685 = vmatpush1.msra.mxu0 %v628
      %686 = vmatprep.subr.mxu0 0.0
      %687 = vmatpush1.msra.mxu0 0.0
      %688 = vmatprep.subr.mxu0 0.0
      %689 = vmatpush1.msra.mxu0 0.0
      %690 = vmatprep.subr.mxu0 0.0
      %691 = vmatpush1.msra.mxu0 0.0
      %692 = vmatprep.subr.mxu0 0.0
      %693 = vmatpush1.msra.mxu0 0.0
      %694 = vmatprep.subr.mxu0 0.0
      %695 = vmatpush1.msra.mxu0 0.0
      %696 = vmatprep.subr.mxu0 0.0
      %697 = vmatpush1.msra.mxu0 0.0
      %698 = vmatprep.subr.mxu0 0.0
      %699 = vmatpush1.msra.mxu0 0.0
      %700 = vmatprep.subr.mxu0 0.0
      %701 = vmatpush1.msra.mxu0 0.0
      %702 = vmatprep.subr.mxu0 0.0
      %703 = vmatpush1.msra.mxu0 0.0
      %704 = vmatprep.subr.mxu0 0.0
      %705 = vmatpush1.msra.mxu0 0.0
      %706 = vmatprep.subr.mxu0 0.0
      %707 = vmatpush1.msra.mxu0 0.0
      %708 = vmatprep.subr.mxu0 0.0
      %709 = vmatpush1.msra.mxu0 0.0
      %710 = vmatprep.subr.mxu0 0.0
      %711 = vmatpush1.msra.mxu0 0.0
      %712 = vmatprep.subr.mxu0 0.0
      %713 = vmatpush1.msra.mxu0 0.0
      %714 = vmatprep.subr.mxu0 0.0
      %715 = vmatpush1.msra.mxu0 0.0
      %716 = vmatprep.subr.mxu0 0.0
      %717 = vmatpush1.msra.mxu0 0.0
      %718 = vmatprep.subr.mxu0 0.0
      %719 = vmatpush1.msra.mxu0 0.0
      %720 = vmatprep.subr.mxu0 0.0
      %721 = vmatpush1.msra.mxu0 0.0
      %722 = vmatprep.subr.mxu0 0.0
      %723 = vmatpush1.msra.mxu0 0.0
      %724 = vmatprep.subr.mxu0 0.0
      %725 = vmatpush1.msra.mxu0 0.0
      %726 = vmatprep.subr.mxu0 0.0
      %727 = vmatpush1.msra.mxu0 0.0
      %728 = vmatprep.subr.mxu0 0.0
      %729 = vmatpush1.msra.mxu0 0.0
      %730 = vmatprep.subr.mxu0 0.0
      %731 = vmatpush1.msra.mxu0 0.0
      %732 = vmatprep.subr.mxu0 0.0
      %733 = vmatpush1.msra.mxu0 0.0
      %734 = vmatprep.subr.mxu0 0.0
      %735 = vmatpush1.msra.mxu0 0.0
      %736 = vmatprep.subr.mxu0 0.0
      %737 = vmatpush1.msra.mxu0 0.0
      %738 = vmatprep.subr.mxu0 0.0
      %739 = vmatpush1.msra.mxu0 0.0
      %740 = vmatprep.subr.mxu0 0.0
      %741 = vmatpush1.msra.mxu0 0.0
      %742 = vmatprep.mubr.f32.mxu0 0.0
      %743 = vmatmul.mubr.f32.gmra.mrb[0].mxu0 %v631
      %v744 = vpop.f32.mrb[0].mxu0
      %v745 = vadd.f32 0.0, %v744
      %v746 = vpop.f32.mrb[0].mxu0
      %747 = vmatprep.mubr.f32.mxu0 0.0
      %748 = vmatmul.mubr.f32.gmra.mrb[0].mxu0 %v634
      %v749 = vpop.f32.mrb[0].mxu0
      %v750 = vadd.f32 0.0, %v749
      %v751 = vpop.f32.mrb[0].mxu0
      %752 = vmatprep.mubr.f32.mxu0 0.0
      %753 = vmatmul.mubr.f32.gmra.mrb[0].mxu0 %v637
      %v754 = vpop.f32.mrb[0].mxu0
      %v755 = vadd.f32 0.0, %v754
      %v756 = vpop.f32.mrb[0].mxu0
      %757 = vmatprep.mubr.f32.mxu0 0.0
      %758 = vmatmul.mubr.f32.gmra.mrb[0].mxu0 %v640
      %v759 = vpop.f32.mrb[0].mxu0
      %v760 = vadd.f32 0.0, %v759
      %v761 = vpop.f32.mrb[0].mxu0
      %762 = vmatprep.mubr.f32.mxu0 0.0
      %763 = vmatmul.mubr.f32.gmra.mrb[0].mxu0 %v643
      %v764 = vpop.f32.mrb[0].mxu0
      %v765 = vadd.f32 0.0, %v764
      %v766 = vpop.f32.mrb[0].mxu0
      %767 = vmatprep.mubr.f32.mxu0 0.0
      %768 = vmatmul.mubr.f32.gmra.mrb[0].mxu0 %v646
      %v769 = vpop.f32.mrb[0].mxu0
      %v770 = vadd.f32 0.0, %v769
      %v771 = vpop.f32.mrb[0].mxu0
      %772 = vmatprep.mubr.f32.mxu0 0.0
      %773 = vmatmul.mubr.f32.gmra.mrb[0].mxu0 %v649
      %v774 = vpop.f32.mrb[0].mxu0
      %v775 = vadd.f32 0.0, %v774
      %v776 = vpop.f32.mrb[0].mxu0
      %777 = vmatprep.mubr.f32.mxu0 0.0
      %778 = vmatmul.mubr.f32.gmra.mrb[0].mxu0 %v652
      %v779 = vpop.f32.mrb[0].mxu0
      %v780 = vadd.f32 0.0, %v779
      %v781 = vpop.f32.mrb[0].mxu0
      %782 = vmatprep.mubr.f32.mxu0 0.0
      %783 = vmatmul.mubr.f32.gmra.mrb[0].mxu0 %v655
      %v784 = vpop.f32.mrb[0].mxu0
      %v785 = vadd.f32 0.0, %v784
      %v786 = vpop.f32.mrb[0].mxu0
      %787 = vmatprep.mubr.f32.mxu0 0.0
      %788 = vmatmul.mubr.f32.gmra.mrb[0].mxu0 %v658
      %v789 = vpop.f32.mrb[0].mxu0
      %v790 = vadd.f32 0.0, %v789
      %v791 = vpop.f32.mrb[0].mxu0
      %792 = vmatprep.mubr.f32.mxu0 0.0
      %793 = vmatmul.mubr.f32.gmra.mrb[0].mxu0 %v661
      %v794 = vpop.f32.mrb[0].mxu0
      %v795 = vadd.f32 0.0, %v794
      %v796 = vpop.f32.mrb[0].mxu0
      %797 = vmatprep.mubr.f32.mxu0 0.0
      %798 = vmatmul.mubr.f32.gmra.mrb[0].mxu0 %v664
      %v799 = vpop.f32.mrb[0].mxu0
      %v800 = vadd.f32 0.0, %v799
      %v801 = vpop.f32.mrb[0].mxu0
      %802 = vmatprep.mubr.f32.mxu0 0.0
      %803 = vmatmul.mubr.f32.gmra.mrb[0].mxu0 %v667
      %v804 = vpop.f32.mrb[0].mxu0
      %v805 = vadd.f32 0.0, %v804
      %v806 = vpop.f32.mrb[0].mxu0
      %807 = vmatprep.mubr.f32.mxu0 0.0
      %808 = vmatmul.mubr.f32.gmra.mrb[0].mxu0 %v670
      %v809 = vpop.f32.mrb[0].mxu0
      %v810 = vadd.f32 0.0, %v809
      %v811 = vpop.f32.mrb[0].mxu0
      %812 = vmatprep.mubr.f32.mxu0 0.0
      %813 = vmatmul.mubr.f32.gmra.mrb[0].mxu0 %v673
      %v814 = vpop.f32.mrb[0].mxu0
      %v815 = vadd.f32 0.0, %v814
      %v816 = vpop.f32.mrb[0].mxu0
      %817 = vmatprep.mubr.f32.mxu0 0.0
      %818 = vmatmul.mubr.f32.gmra.mrb[0].mxu0 %v676
      %v819 = vpop.f32.mrb[0].mxu0
      %v820 = vadd.f32 0.0, %v819
      %v821 = vpop.f32.mrb[0].mxu0
      %822 = vdwg.mxu0
      %823 = vmatprep.subr.mxu0 0.0
      %824 = vmatpush1.msra.mxu0 %v624
      %825 = vmatprep.subr.mxu0 0.0
      %826 = vmatpush1.msra.mxu0 0.0
      %827 = vmatprep.subr.mxu0 0.0
      %828 = vmatpush1.msra.mxu0 0.0
      %829 = vmatprep.subr.mxu0 0.0
      %830 = vmatpush1.msra.mxu0 0.0
      %831 = vmatprep.subr.mxu0 0.0
      %832 = vmatpush1.msra.mxu0 0.0
      %833 = vmatprep.subr.mxu0 0.0
      %834 = vmatpush1.msra.mxu0 0.0
      %835 = vmatprep.subr.mxu0 0.0
      %836 = vmatpush1.msra.mxu0 0.0
      %837 = vmatprep.subr.mxu0 0.0
      %838 = vmatpush1.msra.mxu0 0.0
      %839 = vmatprep.subr.mxu0 0.0
      %840 = vmatpush1.msra.mxu0 0.0
      %841 = vmatprep.subr.mxu0 0.0
      %842 = vmatpush1.msra.mxu0 0.0
      %843 = vmatprep.subr.mxu0 0.0
      %844 = vmatpush1.msra.mxu0 0.0
      %845 = vmatprep.subr.mxu0 0.0
      %846 = vmatpush1.msra.mxu0 0.0
      %847 = vmatprep.subr.mxu0 0.0
      %848 = vmatpush1.msra.mxu0 0.0
      %849 = vmatprep.subr.mxu0 0.0
      %850 = vmatpush1.msra.mxu0 0.0
      %851 = vmatprep.subr.mxu0 0.0
      %852 = vmatpush1.msra.mxu0 0.0
      %853 = vmatprep.subr.mxu0 0.0
      %854 = vmatpush1.msra.mxu0 0.0
      %855 = vmatprep.subr.mxu0 0.0
      %856 = vmatpush1.msra.mxu0 0.0
      %857 = vmatprep.subr.mxu0 0.0
      %858 = vmatpush1.msra.mxu0 0.0
      %859 = vmatprep.subr.mxu0 0.0
      %860 = vmatpush1.msra.mxu0 0.0
      %861 = vmatprep.subr.mxu0 0.0
      %862 = vmatpush1.msra.mxu0 0.0
      %863 = vmatprep.subr.mxu0 0.0
      %864 = vmatpush1.msra.mxu0 0.0
      %865 = vmatprep.subr.mxu0 0.0
      %866 = vmatpush1.msra.mxu0 0.0
      %867 = vmatprep.subr.mxu0 0.0
      %868 = vmatpush1.msra.mxu0 0.0
      %869 = vmatprep.subr.mxu0 0.0
      %870 = vmatpush1.msra.mxu0 0.0
      %871 = vmatprep.subr.mxu0 0.0
      %872 = vmatpush1.msra.mxu0 0.0
      %873 = vmatprep.subr.mxu0 0.0
      %874 = vmatpush1.msra.mxu0 0.0
      %875 = vmatprep.subr.mxu0 0.0
      %876 = vmatpush1.msra.mxu0 0.0
      %877 = vmatprep.subr.mxu0 0.0
      %878 = vmatpush1.msra.mxu0 0.0
      %879 = vmatprep.subr.mxu0 0.0
      %880 = vmatpush1.msra.mxu0 0.0
      %881 = vmatprep.subr.mxu0 0.0
      %882 = vmatpush1.msra.mxu0 0.0
      %883 = vmatprep.subr.mxu0 0.0
      %884 = vmatpush1.msra.mxu0 0.0
      %885 = vmatprep.subr.mxu0 0.0
      %886 = vmatpush1.msra.mxu0 0.0
      %887 = vmatprep.mubr.f32.mxu0 0.0
      %888 = vmatmul.mubr.f32.gmra.mrb[0].mxu0 %v416
      %v889 = vpop.f32.mrb[0].mxu0
      %v890 = vadd.f32 %v745, %v889
      %v891 = vpop.f32.mrb[0].mxu0
      %892 = vmatprep.mubr.f32.mxu0 0.0
      %893 = vmatmul.mubr.f32.gmra.mrb[0].mxu0 %v419
      %v894 = vpop.f32.mrb[0].mxu0
      %v895 = vadd.f32 %v750, %v894
      %v896 = vpop.f32.mrb[0].mxu0
      %897 = vmatprep.mubr.f32.mxu0 0.0
      %898 = vmatmul.mubr.f32.gmra.mrb[0].mxu0 %v422
      %v899 = vpop.f32.mrb[0].mxu0
      %v900 = vadd.f32 %v755, %v899
      %v901 = vpop.f32.mrb[0].mxu0
      %902 = vmatprep.mubr.f32.mxu0 0.0
      %903 = vmatmul.mubr.f32.gmra.mrb[0].mxu0 %v425
      %v904 = vpop.f32.mrb[0].mxu0
      %v905 = vadd.f32 %v760, %v904
      %v906 = vpop.f32.mrb[0].mxu0
      %907 = vmatprep.mubr.f32.mxu0 0.0
      %908 = vmatmul.mubr.f32.gmra.mrb[0].mxu0 %v428
      %v909 = vpop.f32.mrb[0].mxu0
      %v910 = vadd.f32 %v765, %v909
      %v911 = vpop.f32.mrb[0].mxu0
      %912 = vmatprep.mubr.f32.mxu0 0.0
      %913 = vmatmul.mubr.f32.gmra.mrb[0].mxu0 %v431
      %v914 = vpop.f32.mrb[0].mxu0
      %v915 = vadd.f32 %v770, %v914
      %v916 = vpop.f32.mrb[0].mxu0
      %917 = vmatprep.mubr.f32.mxu0 0.0
      %918 = vmatmul.mubr.f32.gmra.mrb[0].mxu0 %v434
      %v919 = vpop.f32.mrb[0].mxu0
      %v920 = vadd.f32 %v775, %v919
      %v921 = vpop.f32.mrb[0].mxu0
      %922 = vmatprep.mubr.f32.mxu0 0.0
      %923 = vmatmul.mubr.f32.gmra.mrb[0].mxu0 %v437
      %v924 = vpop.f32.mrb[0].mxu0
      %v925 = vadd.f32 %v780, %v924
      %v926 = vpop.f32.mrb[0].mxu0
      %927 = vmatprep.mubr.f32.mxu0 0.0
      %928 = vmatmul.mubr.f32.gmra.mrb[0].mxu0 %v440
      %v929 = vpop.f32.mrb[0].mxu0
      %v930 = vadd.f32 %v785, %v929
      %v931 = vpop.f32.mrb[0].mxu0
      %932 = vmatprep.mubr.f32.mxu0 0.0
      %933 = vmatmul.mubr.f32.gmra.mrb[0].mxu0 %v443
      %v934 = vpop.f32.mrb[0].mxu0
      %v935 = vadd.f32 %v790, %v934
      %v936 = vpop.f32.mrb[0].mxu0
      %937 = vmatprep.mubr.f32.mxu0 0.0
      %938 = vmatmul.mubr.f32.gmra.mrb[0].mxu0 %v446
      %v939 = vpop.f32.mrb[0].mxu0
      %v940 = vadd.f32 %v795, %v939
      %v941 = vpop.f32.mrb[0].mxu0
      %942 = vmatprep.mubr.f32.mxu0 0.0
      %943 = vmatmul.mubr.f32.gmra.mrb[0].mxu0 %v449
      %v944 = vpop.f32.mrb[0].mxu0
      %v945 = vadd.f32 %v800, %v944
      %v946 = vpop.f32.mrb[0].mxu0
      %947 = vmatprep.mubr.f32.mxu0 0.0
      %948 = vmatmul.mubr.f32.gmra.mrb[0].mxu0 %v452
      %v949 = vpop.f32.mrb[0].mxu0
      %v950 = vadd.f32 %v805, %v949
      %v951 = vpop.f32.mrb[0].mxu0
      %952 = vmatprep.mubr.f32.mxu0 0.0
      %953 = vmatmul.mubr.f32.gmra.mrb[0].mxu0 %v455
      %v954 = vpop.f32.mrb[0].mxu0
      %v955 = vadd.f32 %v810, %v954
      %v956 = vpop.f32.mrb[0].mxu0
      %957 = vmatprep.mubr.f32.mxu0 0.0
      %958 = vmatmul.mubr.f32.gmra.mrb[0].mxu0 %v458
      %v959 = vpop.f32.mrb[0].mxu0
      %v960 = vadd.f32 %v815, %v959
      %v961 = vpop.f32.mrb[0].mxu0
      %962 = vmatprep.mubr.f32.mxu0 0.0
      %963 = vmatmul.mubr.f32.gmra.mrb[0].mxu0 %v461
      %v964 = vpop.f32.mrb[0].mxu0
      %v965 = vadd.f32 %v820, %v964
      %v966 = vpop.f32.mrb[0].mxu0
      %967 = vdwg.mxu0
      %v968 = vld [vmem:[%s5] sm:$0x1]
      %v970 = vlaneseq
      %v971 = vshrl.u32 %v970, 7
      %v972 = vsub.s32 0, %v971
      %v973 = vrot.slane %v968, %v972
      %v975 = vadd.f32 %v890, %v973
      %v976 = vadd.f32 %v895, %v973
      %v977 = vadd.f32 %v900, %v973
      %v978 = vadd.f32 %v905, %v973
      %v979 = vadd.f32 %v910, %v973
      %v980 = vadd.f32 %v915, %v973
      %v981 = vadd.f32 %v920, %v973
      %v982 = vadd.f32 %v925, %v973
      %v983 = vadd.f32 %v930, %v973
      %v984 = vadd.f32 %v935, %v973
      %v985 = vadd.f32 %v940, %v973
      %v986 = vadd.f32 %v945, %v973
      %v987 = vadd.f32 %v950, %v973
      %v988 = vadd.f32 %v955, %v973
      %v989 = vadd.f32 %v960, %v973
      %v990 = vadd.f32 %v965, %v973
      %v991 = vtanh.pop %v975
      %v992 = vtanh.pop %v976
      %v993 = vtanh.pop %v977
      %v994 = vtanh.pop %v978
      %v995 = vtanh.pop %v979
      %v996 = vtanh.pop %v980
      %v997 = vtanh.pop %v981
      %v998 = vtanh.pop %v982
      %v999 = vtanh.pop %v983
      %v1000 = vtanh.pop %v984
      %v1001 = vtanh.pop %v985
      %v1002 = vtanh.pop %v986
      %v1003 = vtanh.pop %v987
      %v1004 = vtanh.pop %v988
      %v1005 = vtanh.pop %v989
      %v1006 = vtanh.pop %v990
      %v1007 = vld [vmem:[%s6] sm:$0xff]
      %v1008 = vld [vmem:[%s6 + $0x8] sm:$0xff]
      %v1009 = vld [vmem:[%s6 + $0x10] sm:$0xff]
      %v1010 = vld [vmem:[%s6 + $0x18] sm:$0xff]
      %v1011 = vld [vmem:[%s7] sm:$0xff]
      %v1012 = vld [vmem:[%s7 + $0x8] sm:$0xff]
      %v1013 = vld [vmem:[%s7 + $0x10] sm:$0xff]
      %v1014 = vld [vmem:[%s7 + $0x18] sm:$0xff]
      %v1016 = vsel %vm629, %v991, 0
      %v1019 = vsel %vm629, %v992, 0
      %v1022 = vsel %vm629, %v993, 0
      %v1025 = vsel %vm629, %v994, 0
      %v1028 = vsel %vm629, %v995, 0
      %v1031 = vsel %vm629, %v996, 0
      %v1034 = vsel %vm629, %v997, 0
      %v1037 = vsel %vm629, %v998, 0
      %v1040 = vsel %vm629, %v999, 0
      %v1043 = vsel %vm629, %v1000, 0
      %v1046 = vsel %vm629, %v1001, 0
      %v1049 = vsel %vm629, %v1002, 0
      %v1052 = vsel %vm629, %v1003, 0
      %v1055 = vsel %vm629, %v1004, 0
      %v1058 = vsel %vm629, %v1005, 0
      %v1061 = vsel %vm629, %v1006, 0
      %1063 = vmatprep.subr.mxu0 0.0
      %1064 = vmatpush1.msra.mxu0 %v1011
      %1065 = vmatprep.subr.mxu0 0.0
      %1066 = vmatpush1.msra.mxu0 %v1012
      %1067 = vmatprep.subr.mxu0 0.0
      %1068 = vmatpush1.msra.mxu0 %v1013
      %1069 = vmatprep.subr.mxu0 0.0
      %1070 = vmatpush1.msra.mxu0 %v1014
      %1071 = vmatprep.subr.mxu0 0.0
      %1072 = vmatpush1.msra.mxu0 0.0
      %1073 = vmatprep.subr.mxu0 0.0
      %1074 = vmatpush1.msra.mxu0 0.0
      %1075 = vmatprep.subr.mxu0 0.0
      %1076 = vmatpush1.msra.mxu0 0.0
      %1077 = vmatprep.subr.mxu0 0.0
      %1078 = vmatpush1.msra.mxu0 0.0
      %1079 = vmatprep.subr.mxu0 0.0
      %1080 = vmatpush1.msra.mxu0 0.0
      %1081 = vmatprep.subr.mxu0 0.0
      %1082 = vmatpush1.msra.mxu0 0.0
      %1083 = vmatprep.subr.mxu0 0.0
      %1084 = vmatpush1.msra.mxu0 0.0
      %1085 = vmatprep.subr.mxu0 0.0
      %1086 = vmatpush1.msra.mxu0 0.0
      %1087 = vmatprep.subr.mxu0 0.0
      %1088 = vmatpush1.msra.mxu0 0.0
      %1089 = vmatprep.subr.mxu0 0.0
      %1090 = vmatpush1.msra.mxu0 0.0
      %1091 = vmatprep.subr.mxu0 0.0
      %1092 = vmatpush1.msra.mxu0 0.0
      %1093 = vmatprep.subr.mxu0 0.0
      %1094 = vmatpush1.msra.mxu0 0.0
      %1095 = vmatprep.subr.mxu0 0.0
      %1096 = vmatpush1.msra.mxu0 0.0
      %1097 = vmatprep.subr.mxu0 0.0
      %1098 = vmatpush1.msra.mxu0 0.0
      %1099 = vmatprep.subr.mxu0 0.0
      %1100 = vmatpush1.msra.mxu0 0.0
      %1101 = vmatprep.subr.mxu0 0.0
      %1102 = vmatpush1.msra.mxu0 0.0
      %1103 = vmatprep.subr.mxu0 0.0
      %1104 = vmatpush1.msra.mxu0 0.0
      %1105 = vmatprep.subr.mxu0 0.0
      %1106 = vmatpush1.msra.mxu0 0.0
      %1107 = vmatprep.subr.mxu0 0.0
      %1108 = vmatpush1.msra.mxu0 0.0
      %1109 = vmatprep.subr.mxu0 0.0
      %1110 = vmatpush1.msra.mxu0 0.0
      %1111 = vmatprep.subr.mxu0 0.0
      %1112 = vmatpush1.msra.mxu0 0.0
      %1113 = vmatprep.subr.mxu0 0.0
      %1114 = vmatpush1.msra.mxu0 0.0
      %1115 = vmatprep.subr.mxu0 0.0
      %1116 = vmatpush1.msra.mxu0 0.0
      %1117 = vmatprep.subr.mxu0 0.0
      %1118 = vmatpush1.msra.mxu0 0.0
      %1119 = vmatprep.subr.mxu0 0.0
      %1120 = vmatpush1.msra.mxu0 0.0
      %1121 = vmatprep.subr.mxu0 0.0
      %1122 = vmatpush1.msra.mxu0 0.0
      %1123 = vmatprep.subr.mxu0 0.0
      %1124 = vmatpush1.msra.mxu0 0.0
      %1125 = vmatprep.subr.mxu0 0.0
      %1126 = vmatpush1.msra.mxu0 0.0
      %1127 = vmatprep.mubr.f32.mxu0 0.0
      %1128 = vmatmul.mubr.f32.gmra.mrb[0].mxu0 %v1016
      %v1129 = vpop.f32.mrb[0].mxu0
      %v1130 = vadd.f32 0.0, %v1129
      %v1131 = vpop.f32.mrb[0].mxu0
      %1132 = vmatprep.mubr.f32.mxu0 0.0
      %1133 = vmatmul.mubr.f32.gmra.mrb[0].mxu0 %v1019
      %v1134 = vpop.f32.mrb[0].mxu0
      %v1135 = vadd.f32 0.0, %v1134
      %v1136 = vpop.f32.mrb[0].mxu0
      %1137 = vmatprep.mubr.f32.mxu0 0.0
      %1138 = vmatmul.mubr.f32.gmra.mrb[0].mxu0 %v1022
      %v1139 = vpop.f32.mrb[0].mxu0
      %v1140 = vadd.f32 0.0, %v1139
      %v1141 = vpop.f32.mrb[0].mxu0
      %1142 = vmatprep.mubr.f32.mxu0 0.0
      %1143 = vmatmul.mubr.f32.gmra.mrb[0].mxu0 %v1025
      %v1144 = vpop.f32.mrb[0].mxu0
      %v1145 = vadd.f32 0.0, %v1144
      %v1146 = vpop.f32.mrb[0].mxu0
      %1147 = vmatprep.mubr.f32.mxu0 0.0
      %1148 = vmatmul.mubr.f32.gmra.mrb[0].mxu0 %v1028
      %v1149 = vpop.f32.mrb[0].mxu0
      %v1150 = vadd.f32 0.0, %v1149
      %v1151 = vpop.f32.mrb[0].mxu0
      %1152 = vmatprep.mubr.f32.mxu0 0.0
      %1153 = vmatmul.mubr.f32.gmra.mrb[0].mxu0 %v1031
      %v1154 = vpop.f32.mrb[0].mxu0
      %v1155 = vadd.f32 0.0, %v1154
      %v1156 = vpop.f32.mrb[0].mxu0
      %1157 = vmatprep.mubr.f32.mxu0 0.0
      %1158 = vmatmul.mubr.f32.gmra.mrb[0].mxu0 %v1034
      %v1159 = vpop.f32.mrb[0].mxu0
      %v1160 = vadd.f32 0.0, %v1159
      %v1161 = vpop.f32.mrb[0].mxu0
      %1162 = vmatprep.mubr.f32.mxu0 0.0
      %1163 = vmatmul.mubr.f32.gmra.mrb[0].mxu0 %v1037
      %v1164 = vpop.f32.mrb[0].mxu0
      %v1165 = vadd.f32 0.0, %v1164
      %v1166 = vpop.f32.mrb[0].mxu0
      %1167 = vmatprep.mubr.f32.mxu0 0.0
      %1168 = vmatmul.mubr.f32.gmra.mrb[0].mxu0 %v1040
      %v1169 = vpop.f32.mrb[0].mxu0
      %v1170 = vadd.f32 0.0, %v1169
      %v1171 = vpop.f32.mrb[0].mxu0
      %1172 = vmatprep.mubr.f32.mxu0 0.0
      %1173 = vmatmul.mubr.f32.gmra.mrb[0].mxu0 %v1043
      %v1174 = vpop.f32.mrb[0].mxu0
      %v1175 = vadd.f32 0.0, %v1174
      %v1176 = vpop.f32.mrb[0].mxu0
      %1177 = vmatprep.mubr.f32.mxu0 0.0
      %1178 = vmatmul.mubr.f32.gmra.mrb[0].mxu0 %v1046
      %v1179 = vpop.f32.mrb[0].mxu0
      %v1180 = vadd.f32 0.0, %v1179
      %v1181 = vpop.f32.mrb[0].mxu0
      %1182 = vmatprep.mubr.f32.mxu0 0.0
      %1183 = vmatmul.mubr.f32.gmra.mrb[0].mxu0 %v1049
      %v1184 = vpop.f32.mrb[0].mxu0
      %v1185 = vadd.f32 0.0, %v1184
      %v1186 = vpop.f32.mrb[0].mxu0
      %1187 = vmatprep.mubr.f32.mxu0 0.0
      %1188 = vmatmul.mubr.f32.gmra.mrb[0].mxu0 %v1052
      %v1189 = vpop.f32.mrb[0].mxu0
      %v1190 = vadd.f32 0.0, %v1189
      %v1191 = vpop.f32.mrb[0].mxu0
      %1192 = vmatprep.mubr.f32.mxu0 0.0
      %1193 = vmatmul.mubr.f32.gmra.mrb[0].mxu0 %v1055
      %v1194 = vpop.f32.mrb[0].mxu0
      %v1195 = vadd.f32 0.0, %v1194
      %v1196 = vpop.f32.mrb[0].mxu0
      %1197 = vmatprep.mubr.f32.mxu0 0.0
      %1198 = vmatmul.mubr.f32.gmra.mrb[0].mxu0 %v1058
      %v1199 = vpop.f32.mrb[0].mxu0
      %v1200 = vadd.f32 0.0, %v1199
      %v1201 = vpop.f32.mrb[0].mxu0
      %1202 = vmatprep.mubr.f32.mxu0 0.0
      %1203 = vmatmul.mubr.f32.gmra.mrb[0].mxu0 %v1061
      %v1204 = vpop.f32.mrb[0].mxu0
      %v1205 = vadd.f32 0.0, %v1204
      %v1206 = vpop.f32.mrb[0].mxu0
      %1207 = vdwg.mxu0
      %1208 = vmatprep.subr.mxu0 0.0
      %1209 = vmatpush1.msra.mxu0 %v1007
      %1210 = vmatprep.subr.mxu0 0.0
      %1211 = vmatpush1.msra.mxu0 %v1008
      %1212 = vmatprep.subr.mxu0 0.0
      %1213 = vmatpush1.msra.mxu0 %v1009
      %1214 = vmatprep.subr.mxu0 0.0
      %1215 = vmatpush1.msra.mxu0 %v1010
      %1216 = vmatprep.subr.mxu0 0.0
      %1217 = vmatpush1.msra.mxu0 0.0
      %1218 = vmatprep.subr.mxu0 0.0
      %1219 = vmatpush1.msra.mxu0 0.0
      %1220 = vmatprep.subr.mxu0 0.0
      %1221 = vmatpush1.msra.mxu0 0.0
      %1222 = vmatprep.subr.mxu0 0.0
      %1223 = vmatpush1.msra.mxu0 0.0
      %1224 = vmatprep.subr.mxu0 0.0
      %1225 = vmatpush1.msra.mxu0 0.0
      %1226 = vmatprep.subr.mxu0 0.0
      %1227 = vmatpush1.msra.mxu0 0.0
      %1228 = vmatprep.subr.mxu0 0.0
      %1229 = vmatpush1.msra.mxu0 0.0
      %1230 = vmatprep.subr.mxu0 0.0
      %1231 = vmatpush1.msra.mxu0 0.0
      %1232 = vmatprep.subr.mxu0 0.0
      %1233 = vmatpush1.msra.mxu0 0.0
      %1234 = vmatprep.subr.mxu0 0.0
      %1235 = vmatpush1.msra.mxu0 0.0
      %1236 = vmatprep.subr.mxu0 0.0
      %1237 = vmatpush1.msra.mxu0 0.0
      %1238 = vmatprep.subr.mxu0 0.0
      %1239 = vmatpush1.msra.mxu0 0.0
      %1240 = vmatprep.subr.mxu0 0.0
      %1241 = vmatpush1.msra.mxu0 0.0
      %1242 = vmatprep.subr.mxu0 0.0
      %1243 = vmatpush1.msra.mxu0 0.0
      %1244 = vmatprep.subr.mxu0 0.0
      %1245 = vmatpush1.msra.mxu0 0.0
      %1246 = vmatprep.subr.mxu0 0.0
      %1247 = vmatpush1.msra.mxu0 0.0
      %1248 = vmatprep.subr.mxu0 0.0
      %1249 = vmatpush1.msra.mxu0 0.0
      %1250 = vmatprep.subr.mxu0 0.0
      %1251 = vmatpush1.msra.mxu0 0.0
      %1252 = vmatprep.subr.mxu0 0.0
      %1253 = vmatpush1.msra.mxu0 0.0
      %1254 = vmatprep.subr.mxu0 0.0
      %1255 = vmatpush1.msra.mxu0 0.0
      %1256 = vmatprep.subr.mxu0 0.0
      %1257 = vmatpush1.msra.mxu0 0.0
      %1258 = vmatprep.subr.mxu0 0.0
      %1259 = vmatpush1.msra.mxu0 0.0
      %1260 = vmatprep.subr.mxu0 0.0
      %1261 = vmatpush1.msra.mxu0 0.0
      %1262 = vmatprep.subr.mxu0 0.0
      %1263 = vmatpush1.msra.mxu0 0.0
      %1264 = vmatprep.subr.mxu0 0.0
      %1265 = vmatpush1.msra.mxu0 0.0
      %1266 = vmatprep.subr.mxu0 0.0
      %1267 = vmatpush1.msra.mxu0 0.0
      %1268 = vmatprep.subr.mxu0 0.0
      %1269 = vmatpush1.msra.mxu0 0.0
      %1270 = vmatprep.subr.mxu0 0.0
      %1271 = vmatpush1.msra.mxu0 0.0
      %1272 = vmatprep.mubr.f32.mxu0 0.0
      %1273 = vmatmul.mubr.f32.gmra.mrb[0].mxu0 %v631
      %v1274 = vpop.f32.mrb[0].mxu0
      %v1275 = vadd.f32 %v1130, %v1274
      %v1276 = vpop.f32.mrb[0].mxu0
      %1277 = vmatprep.mubr.f32.mxu0 0.0
      %1278 = vmatmul.mubr.f32.gmra.mrb[0].mxu0 %v634
      %v1279 = vpop.f32.mrb[0].mxu0
      %v1280 = vadd.f32 %v1135, %v1279
      %v1281 = vpop.f32.mrb[0].mxu0
      %1282 = vmatprep.mubr.f32.mxu0 0.0
      %1283 = vmatmul.mubr.f32.gmra.mrb[0].mxu0 %v637
      %v1284 = vpop.f32.mrb[0].mxu0
      %v1285 = vadd.f32 %v1140, %v1284
      %v1286 = vpop.f32.mrb[0].mxu0
      %1287 = vmatprep.mubr.f32.mxu0 0.0
      %1288 = vmatmul.mubr.f32.gmra.mrb[0].mxu0 %v640
      %v1289 = vpop.f32.mrb[0].mxu0
      %v1290 = vadd.f32 %v1145, %v1289
      %v1291 = vpop.f32.mrb[0].mxu0
      %1292 = vmatprep.mubr.f32.mxu0 0.0
      %1293 = vmatmul.mubr.f32.gmra.mrb[0].mxu0 %v643
      %v1294 = vpop.f32.mrb[0].mxu0
      %v1295 = vadd.f32 %v1150, %v1294
      %v1296 = vpop.f32.mrb[0].mxu0
      %1297 = vmatprep.mubr.f32.mxu0 0.0
      %1298 = vmatmul.mubr.f32.gmra.mrb[0].mxu0 %v646
      %v1299 = vpop.f32.mrb[0].mxu0
      %v1300 = vadd.f32 %v1155, %v1299
      %v1301 = vpop.f32.mrb[0].mxu0
      %1302 = vmatprep.mubr.f32.mxu0 0.0
      %1303 = vmatmul.mubr.f32.gmra.mrb[0].mxu0 %v649
      %v1304 = vpop.f32.mrb[0].mxu0
      %v1305 = vadd.f32 %v1160, %v1304
      %v1306 = vpop.f32.mrb[0].mxu0
      %1307 = vmatprep.mubr.f32.mxu0 0.0
      %1308 = vmatmul.mubr.f32.gmra.mrb[0].mxu0 %v652
      %v1309 = vpop.f32.mrb[0].mxu0
      %v1310 = vadd.f32 %v1165, %v1309
      %v1311 = vpop.f32.mrb[0].mxu0
      %1312 = vmatprep.mubr.f32.mxu0 0.0
      %1313 = vmatmul.mubr.f32.gmra.mrb[0].mxu0 %v655
      %v1314 = vpop.f32.mrb[0].mxu0
      %v1315 = vadd.f32 %v1170, %v1314
      %v1316 = vpop.f32.mrb[0].mxu0
      %1317 = vmatprep.mubr.f32.mxu0 0.0
      %1318 = vmatmul.mubr.f32.gmra.mrb[0].mxu0 %v658
      %v1319 = vpop.f32.mrb[0].mxu0
      %v1320 = vadd.f32 %v1175, %v1319
      %v1321 = vpop.f32.mrb[0].mxu0
      %1322 = vmatprep.mubr.f32.mxu0 0.0
      %1323 = vmatmul.mubr.f32.gmra.mrb[0].mxu0 %v661
      %v1324 = vpop.f32.mrb[0].mxu0
      %v1325 = vadd.f32 %v1180, %v1324
      %v1326 = vpop.f32.mrb[0].mxu0
      %1327 = vmatprep.mubr.f32.mxu0 0.0
      %1328 = vmatmul.mubr.f32.gmra.mrb[0].mxu0 %v664
      %v1329 = vpop.f32.mrb[0].mxu0
      %v1330 = vadd.f32 %v1185, %v1329
      %v1331 = vpop.f32.mrb[0].mxu0
      %1332 = vmatprep.mubr.f32.mxu0 0.0
      %1333 = vmatmul.mubr.f32.gmra.mrb[0].mxu0 %v667
      %v1334 = vpop.f32.mrb[0].mxu0
      %v1335 = vadd.f32 %v1190, %v1334
      %v1336 = vpop.f32.mrb[0].mxu0
      %1337 = vmatprep.mubr.f32.mxu0 0.0
      %1338 = vmatmul.mubr.f32.gmra.mrb[0].mxu0 %v670
      %v1339 = vpop.f32.mrb[0].mxu0
      %v1340 = vadd.f32 %v1195, %v1339
      %v1341 = vpop.f32.mrb[0].mxu0
      %1342 = vmatprep.mubr.f32.mxu0 0.0
      %1343 = vmatmul.mubr.f32.gmra.mrb[0].mxu0 %v673
      %v1344 = vpop.f32.mrb[0].mxu0
      %v1345 = vadd.f32 %v1200, %v1344
      %v1346 = vpop.f32.mrb[0].mxu0
      %1347 = vmatprep.mubr.f32.mxu0 0.0
      %1348 = vmatmul.mubr.f32.gmra.mrb[0].mxu0 %v676
      %v1349 = vpop.f32.mrb[0].mxu0
      %v1350 = vadd.f32 %v1205, %v1349
      %v1351 = vpop.f32.mrb[0].mxu0
      %1352 = vdwg.mxu0
      %v1353 = vld [vmem:[%s8] sm:$0x1]
      %v1355 = vlaneseq
      %v1356 = vshrl.u32 %v1355, 7
      %v1357 = vsub.s32 0, %v1356
      %v1358 = vrot.slane %v1353, %v1357
      %v1360 = vadd.f32 %v1275, %v1358
      %v1361 = vadd.f32 %v1280, %v1358
      %v1362 = vadd.f32 %v1285, %v1358
      %v1363 = vadd.f32 %v1290, %v1358
      %v1364 = vadd.f32 %v1295, %v1358
      %v1365 = vadd.f32 %v1300, %v1358
      %v1366 = vadd.f32 %v1305, %v1358
      %v1367 = vadd.f32 %v1310, %v1358
      %v1368 = vadd.f32 %v1315, %v1358
      %v1369 = vadd.f32 %v1320, %v1358
      %v1370 = vadd.f32 %v1325, %v1358
      %v1371 = vadd.f32 %v1330, %v1358
      %v1372 = vadd.f32 %v1335, %v1358
      %v1373 = vadd.f32 %v1340, %v1358
      %v1374 = vadd.f32 %v1345, %v1358
      %v1375 = vadd.f32 %v1350, %v1358
      %v1376 = vtanh.pop %v1360
      %v1377 = vtanh.pop %v1361
      %v1378 = vtanh.pop %v1362
      %v1379 = vtanh.pop %v1363
      %v1380 = vtanh.pop %v1364
      %v1381 = vtanh.pop %v1365
      %v1382 = vtanh.pop %v1366
      %v1383 = vtanh.pop %v1367
      %v1384 = vtanh.pop %v1368
      %v1385 = vtanh.pop %v1369
      %v1386 = vtanh.pop %v1370
      %v1387 = vtanh.pop %v1371
      %v1388 = vtanh.pop %v1372
      %v1389 = vtanh.pop %v1373
      %v1390 = vtanh.pop %v1374
      %v1391 = vtanh.pop %v1375
      %v1392 = vld [vmem:[%s9] sm:$0xff]
      %v1393 = vld [vmem:[%s10] sm:$0x1]
      %v1395 = vlaneseq
      %v1396 = vshrl.u32 %v1395, 7
      %v1397 = vsub.s32 0, %v1396
      %v1398 = vrot.slane %v1393, %v1397
      %v1401 = vsel %vm414, %v1376, 0
      %v1404 = vsel %vm414, %v1377, 0
      %v1407 = vsel %vm414, %v1378, 0
      %v1410 = vsel %vm414, %v1379, 0
      %v1413 = vsel %vm414, %v1380, 0
      %v1416 = vsel %vm414, %v1381, 0
      %v1419 = vsel %vm414, %v1382, 0
      %v1422 = vsel %vm414, %v1383, 0
      %v1425 = vsel %vm414, %v1384, 0
      %v1428 = vsel %vm414, %v1385, 0
      %v1431 = vsel %vm414, %v1386, 0
      %v1434 = vsel %vm414, %v1387, 0
      %v1437 = vsel %vm414, %v1388, 0
      %v1440 = vsel %vm414, %v1389, 0
      %v1443 = vsel %vm414, %v1390, 0
      %v1446 = vsel %vm414, %v1391, 0
      %1448 = vmatprep.subr.mxu0 0.0
      %1449 = vmatpush1.msra.mxu0 %v1392
      %1450 = vmatprep.subr.mxu0 0.0
      %1451 = vmatpush1.msra.mxu0 0.0
      %1452 = vmatprep.subr.mxu0 0.0
      %1453 = vmatpush1.msra.mxu0 0.0
      %1454 = vmatprep.subr.mxu0 0.0
      %1455 = vmatpush1.msra.mxu0 0.0
      %1456 = vmatprep.subr.mxu0 0.0
      %1457 = vmatpush1.msra.mxu0 0.0
      %1458 = vmatprep.subr.mxu0 0.0
      %1459 = vmatpush1.msra.mxu0 0.0
      %1460 = vmatprep.subr.mxu0 0.0
      %1461 = vmatpush1.msra.mxu0 0.0
      %1462 = vmatprep.subr.mxu0 0.0
      %1463 = vmatpush1.msra.mxu0 0.0
      %1464 = vmatprep.subr.mxu0 0.0
      %1465 = vmatpush1.msra.mxu0 0.0
      %1466 = vmatprep.subr.mxu0 0.0
      %1467 = vmatpush1.msra.mxu0 0.0
      %1468 = vmatprep.subr.mxu0 0.0
      %1469 = vmatpush1.msra.mxu0 0.0
      %1470 = vmatprep.subr.mxu0 0.0
      %1471 = vmatpush1.msra.mxu0 0.0
      %1472 = vmatprep.subr.mxu0 0.0
      %1473 = vmatpush1.msra.mxu0 0.0
      %1474 = vmatprep.subr.mxu0 0.0
      %1475 = vmatpush1.msra.mxu0 0.0
      %1476 = vmatprep.subr.mxu0 0.0
      %1477 = vmatpush1.msra.mxu0 0.0
      %1478 = vmatprep.subr.mxu0 0.0
      %1479 = vmatpush1.msra.mxu0 0.0
      %1480 = vmatprep.subr.mxu0 0.0
      %1481 = vmatpush1.msra.mxu0 0.0
      %1482 = vmatprep.subr.mxu0 0.0
      %1483 = vmatpush1.msra.mxu0 0.0
      %1484 = vmatprep.subr.mxu0 0.0
      %1485 = vmatpush1.msra.mxu0 0.0
      %1486 = vmatprep.subr.mxu0 0.0
      %1487 = vmatpush1.msra.mxu0 0.0
      %1488 = vmatprep.subr.mxu0 0.0
      %1489 = vmatpush1.msra.mxu0 0.0
      %1490 = vmatprep.subr.mxu0 0.0
      %1491 = vmatpush1.msra.mxu0 0.0
      %1492 = vmatprep.subr.mxu0 0.0
      %1493 = vmatpush1.msra.mxu0 0.0
      %1494 = vmatprep.subr.mxu0 0.0
      %1495 = vmatpush1.msra.mxu0 0.0
      %1496 = vmatprep.subr.mxu0 0.0
      %1497 = vmatpush1.msra.mxu0 0.0
      %1498 = vmatprep.subr.mxu0 0.0
      %1499 = vmatpush1.msra.mxu0 0.0
      %1500 = vmatprep.subr.mxu0 0.0
      %1501 = vmatpush1.msra.mxu0 0.0
      %1502 = vmatprep.subr.mxu0 0.0
      %1503 = vmatpush1.msra.mxu0 0.0
      %1504 = vmatprep.subr.mxu0 0.0
      %1505 = vmatpush1.msra.mxu0 0.0
      %1506 = vmatprep.subr.mxu0 0.0
      %1507 = vmatpush1.msra.mxu0 0.0
      %1508 = vmatprep.subr.mxu0 0.0
      %1509 = vmatpush1.msra.mxu0 0.0
      %1510 = vmatprep.subr.mxu0 0.0
      %1511 = vmatpush1.msra.mxu0 0.0
      %1512 = vmatprep.mubr.f32.mxu0 0.0
      %1513 = vmatmul.mubr.f32.gmra.mrb[0].mxu0 %v1401
      %v1514 = vpop.f32.mrb[0].mxu0
      %v1515 = vadd.f32 %v1398, %v1514
      %v1516 = vpop.f32.mrb[0].mxu0
      %1517 = vmatprep.mubr.f32.mxu0 0.0
      %1518 = vmatmul.mubr.f32.gmra.mrb[0].mxu0 %v1404
      %v1519 = vpop.f32.mrb[0].mxu0
      %v1520 = vadd.f32 %v1398, %v1519
      %v1521 = vpop.f32.mrb[0].mxu0
      %1522 = vmatprep.mubr.f32.mxu0 0.0
      %1523 = vmatmul.mubr.f32.gmra.mrb[0].mxu0 %v1407
      %v1524 = vpop.f32.mrb[0].mxu0
      %v1525 = vadd.f32 %v1398, %v1524
      %v1526 = vpop.f32.mrb[0].mxu0
      %1527 = vmatprep.mubr.f32.mxu0 0.0
      %1528 = vmatmul.mubr.f32.gmra.mrb[0].mxu0 %v1410
      %v1529 = vpop.f32.mrb[0].mxu0
      %v1530 = vadd.f32 %v1398, %v1529
      %v1531 = vpop.f32.mrb[0].mxu0
      %1532 = vmatprep.mubr.f32.mxu0 0.0
      %1533 = vmatmul.mubr.f32.gmra.mrb[0].mxu0 %v1413
      %v1534 = vpop.f32.mrb[0].mxu0
      %v1535 = vadd.f32 %v1398, %v1534
      %v1536 = vpop.f32.mrb[0].mxu0
      %1537 = vmatprep.mubr.f32.mxu0 0.0
      %1538 = vmatmul.mubr.f32.gmra.mrb[0].mxu0 %v1416
      %v1539 = vpop.f32.mrb[0].mxu0
      %v1540 = vadd.f32 %v1398, %v1539
      %v1541 = vpop.f32.mrb[0].mxu0
      %1542 = vmatprep.mubr.f32.mxu0 0.0
      %1543 = vmatmul.mubr.f32.gmra.mrb[0].mxu0 %v1419
      %v1544 = vpop.f32.mrb[0].mxu0
      %v1545 = vadd.f32 %v1398, %v1544
      %v1546 = vpop.f32.mrb[0].mxu0
      %1547 = vmatprep.mubr.f32.mxu0 0.0
      %1548 = vmatmul.mubr.f32.gmra.mrb[0].mxu0 %v1422
      %v1549 = vpop.f32.mrb[0].mxu0
      %v1550 = vadd.f32 %v1398, %v1549
      %v1551 = vpop.f32.mrb[0].mxu0
      %1552 = vmatprep.mubr.f32.mxu0 0.0
      %1553 = vmatmul.mubr.f32.gmra.mrb[0].mxu0 %v1425
      %v1554 = vpop.f32.mrb[0].mxu0
      %v1555 = vadd.f32 %v1398, %v1554
      %v1556 = vpop.f32.mrb[0].mxu0
      %1557 = vmatprep.mubr.f32.mxu0 0.0
      %1558 = vmatmul.mubr.f32.gmra.mrb[0].mxu0 %v1428
      %v1559 = vpop.f32.mrb[0].mxu0
      %v1560 = vadd.f32 %v1398, %v1559
      %v1561 = vpop.f32.mrb[0].mxu0
      %1562 = vmatprep.mubr.f32.mxu0 0.0
      %1563 = vmatmul.mubr.f32.gmra.mrb[0].mxu0 %v1431
      %v1564 = vpop.f32.mrb[0].mxu0
      %v1565 = vadd.f32 %v1398, %v1564
      %v1566 = vpop.f32.mrb[0].mxu0
      %1567 = vmatprep.mubr.f32.mxu0 0.0
      %1568 = vmatmul.mubr.f32.gmra.mrb[0].mxu0 %v1434
      %v1569 = vpop.f32.mrb[0].mxu0
      %v1570 = vadd.f32 %v1398, %v1569
      %v1571 = vpop.f32.mrb[0].mxu0
      %1572 = vmatprep.mubr.f32.mxu0 0.0
      %1573 = vmatmul.mubr.f32.gmra.mrb[0].mxu0 %v1437
      %v1574 = vpop.f32.mrb[0].mxu0
      %v1575 = vadd.f32 %v1398, %v1574
      %v1576 = vpop.f32.mrb[0].mxu0
      %1577 = vmatprep.mubr.f32.mxu0 0.0
      %1578 = vmatmul.mubr.f32.gmra.mrb[0].mxu0 %v1440
      %v1579 = vpop.f32.mrb[0].mxu0
      %v1580 = vadd.f32 %v1398, %v1579
      %v1581 = vpop.f32.mrb[0].mxu0
      %1582 = vmatprep.mubr.f32.mxu0 0.0
      %1583 = vmatmul.mubr.f32.gmra.mrb[0].mxu0 %v1443
      %v1584 = vpop.f32.mrb[0].mxu0
      %v1585 = vadd.f32 %v1398, %v1584
      %v1586 = vpop.f32.mrb[0].mxu0
      %1587 = vmatprep.mubr.f32.mxu0 0.0
      %1588 = vmatmul.mubr.f32.gmra.mrb[0].mxu0 %v1446
      %v1589 = vpop.f32.mrb[0].mxu0
      %v1590 = vadd.f32 %v1398, %v1589
      %v1591 = vpop.f32.mrb[0].mxu0
      %1592 = vdwg.mxu0
      %v1593 = vmax.f32 %v1515, 0.0
      %v1594 = vmax.f32 %v1520, 0.0
      %v1595 = vmax.f32 %v1525, 0.0
      %v1596 = vmax.f32 %v1530, 0.0
      %v1597 = vmax.f32 %v1535, 0.0
      %v1598 = vmax.f32 %v1540, 0.0
      %v1599 = vmax.f32 %v1545, 0.0
      %v1600 = vmax.f32 %v1550, 0.0
      %v1601 = vmax.f32 %v1555, 0.0
      %v1602 = vmax.f32 %v1560, 0.0
      %v1603 = vmax.f32 %v1565, 0.0
      %v1604 = vmax.f32 %v1570, 0.0
      %v1605 = vmax.f32 %v1575, 0.0
      %v1606 = vmax.f32 %v1580, 0.0
      %v1607 = vmax.f32 %v1585, 0.0
      %v1608 = vmax.f32 %v1590, 0.0
      %v1609 = vand.u32 2147483647, %v1515
      %v1610 = vand.u32 2147483647, %v1520
      %v1611 = vand.u32 2147483647, %v1525
      %v1612 = vand.u32 2147483647, %v1530
      %v1613 = vand.u32 2147483647, %v1535
      %v1614 = vand.u32 2147483647, %v1540
      %v1615 = vand.u32 2147483647, %v1545
      %v1616 = vand.u32 2147483647, %v1550
      %v1617 = vand.u32 2147483647, %v1555
      %v1618 = vand.u32 2147483647, %v1560
      %v1619 = vand.u32 2147483647, %v1565
      %v1620 = vand.u32 2147483647, %v1570
      %v1621 = vand.u32 2147483647, %v1575
      %v1622 = vand.u32 2147483647, %v1580
      %v1623 = vand.u32 2147483647, %v1585
      %v1624 = vand.u32 2147483647, %v1590
      %v1625 = vsub.f32 0.0, %v1609
      %v1626 = vsub.f32 0.0, %v1610
      %v1627 = vsub.f32 0.0, %v1611
      %v1628 = vsub.f32 0.0, %v1612
      %v1629 = vsub.f32 0.0, %v1613
      %v1630 = vsub.f32 0.0, %v1614
      %v1631 = vsub.f32 0.0, %v1615
      %v1632 = vsub.f32 0.0, %v1616
      %v1633 = vsub.f32 0.0, %v1617
      %v1634 = vsub.f32 0.0, %v1618
      %v1635 = vsub.f32 0.0, %v1619
      %v1636 = vsub.f32 0.0, %v1620
      %v1637 = vsub.f32 0.0, %v1621
      %v1638 = vsub.f32 0.0, %v1622
      %v1639 = vsub.f32 0.0, %v1623
      %v1640 = vsub.f32 0.0, %v1624
      %v1641 = vmul.f32 %v1625, 1.442695
      %v1642 = vpow.pop %v1641
      %v1643 = vmul.f32 %v1626, 1.442695
      %v1644 = vpow.pop %v1643
      %v1645 = vmul.f32 %v1627, 1.442695
      %v1646 = vpow.pop %v1645
      %v1647 = vmul.f32 %v1628, 1.442695
      %v1648 = vpow.pop %v1647
      %v1649 = vmul.f32 %v1629, 1.442695
      %v1650 = vpow.pop %v1649
      %v1651 = vmul.f32 %v1630, 1.442695
      %v1652 = vpow.pop %v1651
      %v1653 = vmul.f32 %v1631, 1.442695
      %v1654 = vpow.pop %v1653
      %v1655 = vmul.f32 %v1632, 1.442695
      %v1656 = vpow.pop %v1655
      %v1657 = vmul.f32 %v1633, 1.442695
      %v1658 = vpow.pop %v1657
      %v1659 = vmul.f32 %v1634, 1.442695
      %v1660 = vpow.pop %v1659
      %v1661 = vmul.f32 %v1635, 1.442695
      %v1662 = vpow.pop %v1661
      %v1663 = vmul.f32 %v1636, 1.442695
      %v1664 = vpow.pop %v1663
      %v1665 = vmul.f32 %v1637, 1.442695
      %v1666 = vpow.pop %v1665
      %v1667 = vmul.f32 %v1638, 1.442695
      %v1668 = vpow.pop %v1667
      %v1669 = vmul.f32 %v1639, 1.442695
      %v1670 = vpow.pop %v1669
      %v1671 = vmul.f32 %v1640, 1.442695
      %v1672 = vpow.pop %v1671
      %v1673 = vadd.f32 %v1642, 1.0
      %v1674 = vlog2.pop %v1673
      %v1675 = vmul.f32 %v1674, 0.6931472
      %v1676 = vmul.f32 -0.5, %v1642
      %v1677 = vadd.f32 %v1676, 1.0
      %v1678 = vmul.f32 %v1677, %v1642
      %v1679 = vand.u32 2147483647, %v1642
      %vm1680 = vcmp.lt.f32.partialorder %v1679, 0.0004427343
      %v1681 = vsel %vm1680, %v1678, %v1675
      %v1682 = vadd.f32 %v1644, 1.0
      %v1683 = vlog2.pop %v1682
      %v1684 = vmul.f32 %v1683, 0.6931472
      %v1685 = vmul.f32 -0.5, %v1644
      %v1686 = vadd.f32 %v1685, 1.0
      %v1687 = vmul.f32 %v1686, %v1644
      %v1688 = vand.u32 2147483647, %v1644
      %vm1689 = vcmp.lt.f32.partialorder %v1688, 0.0004427343
      %v1690 = vsel %vm1689, %v1687, %v1684
      %v1691 = vadd.f32 %v1646, 1.0
      %v1692 = vlog2.pop %v1691
      %v1693 = vmul.f32 %v1692, 0.6931472
      %v1694 = vmul.f32 -0.5, %v1646
      %v1695 = vadd.f32 %v1694, 1.0
      %v1696 = vmul.f32 %v1695, %v1646
      %v1697 = vand.u32 2147483647, %v1646
      %vm1698 = vcmp.lt.f32.partialorder %v1697, 0.0004427343
      %v1699 = vsel %vm1698, %v1696, %v1693
      %v1700 = vadd.f32 %v1648, 1.0
      %v1701 = vlog2.pop %v1700
      %v1702 = vmul.f32 %v1701, 0.6931472
      %v1703 = vmul.f32 -0.5, %v1648
      %v1704 = vadd.f32 %v1703, 1.0
      %v1705 = vmul.f32 %v1704, %v1648
      %v1706 = vand.u32 2147483647, %v1648
      %vm1707 = vcmp.lt.f32.partialorder %v1706, 0.0004427343
      %v1708 = vsel %vm1707, %v1705, %v1702
      %v1709 = vadd.f32 %v1650, 1.0
      %v1710 = vlog2.pop %v1709
      %v1711 = vmul.f32 %v1710, 0.6931472
      %v1712 = vmul.f32 -0.5, %v1650
      %v1713 = vadd.f32 %v1712, 1.0
      %v1714 = vmul.f32 %v1713, %v1650
      %v1715 = vand.u32 2147483647, %v1650
      %vm1716 = vcmp.lt.f32.partialorder %v1715, 0.0004427343
      %v1717 = vsel %vm1716, %v1714, %v1711
      %v1718 = vadd.f32 %v1652, 1.0
      %v1719 = vlog2.pop %v1718
      %v1720 = vmul.f32 %v1719, 0.6931472
      %v1721 = vmul.f32 -0.5, %v1652
      %v1722 = vadd.f32 %v1721, 1.0
      %v1723 = vmul.f32 %v1722, %v1652
      %v1724 = vand.u32 2147483647, %v1652
      %vm1725 = vcmp.lt.f32.partialorder %v1724, 0.0004427343
      %v1726 = vsel %vm1725, %v1723, %v1720
      %v1727 = vadd.f32 %v1654, 1.0
      %v1728 = vlog2.pop %v1727
      %v1729 = vmul.f32 %v1728, 0.6931472
      %v1730 = vmul.f32 -0.5, %v1654
      %v1731 = vadd.f32 %v1730, 1.0
      %v1732 = vmul.f32 %v1731, %v1654
      %v1733 = vand.u32 2147483647, %v1654
      %vm1734 = vcmp.lt.f32.partialorder %v1733, 0.0004427343
      %v1735 = vsel %vm1734, %v1732, %v1729
      %v1736 = vadd.f32 %v1656, 1.0
      %v1737 = vlog2.pop %v1736
      %v1738 = vmul.f32 %v1737, 0.6931472
      %v1739 = vmul.f32 -0.5, %v1656
      %v1740 = vadd.f32 %v1739, 1.0
      %v1741 = vmul.f32 %v1740, %v1656
      %v1742 = vand.u32 2147483647, %v1656
      %vm1743 = vcmp.lt.f32.partialorder %v1742, 0.0004427343
      %v1744 = vsel %vm1743, %v1741, %v1738
      %v1745 = vadd.f32 %v1658, 1.0
      %v1746 = vlog2.pop %v1745
      %v1747 = vmul.f32 %v1746, 0.6931472
      %v1748 = vmul.f32 -0.5, %v1658
      %v1749 = vadd.f32 %v1748, 1.0
      %v1750 = vmul.f32 %v1749, %v1658
      %v1751 = vand.u32 2147483647, %v1658
      %vm1752 = vcmp.lt.f32.partialorder %v1751, 0.0004427343
      %v1753 = vsel %vm1752, %v1750, %v1747
      %v1754 = vadd.f32 %v1660, 1.0
      %v1755 = vlog2.pop %v1754
      %v1756 = vmul.f32 %v1755, 0.6931472
      %v1757 = vmul.f32 -0.5, %v1660
      %v1758 = vadd.f32 %v1757, 1.0
      %v1759 = vmul.f32 %v1758, %v1660
      %v1760 = vand.u32 2147483647, %v1660
      %vm1761 = vcmp.lt.f32.partialorder %v1760, 0.0004427343
      %v1762 = vsel %vm1761, %v1759, %v1756
      %v1763 = vadd.f32 %v1662, 1.0
      %v1764 = vlog2.pop %v1763
      %v1765 = vmul.f32 %v1764, 0.6931472
      %v1766 = vmul.f32 -0.5, %v1662
      %v1767 = vadd.f32 %v1766, 1.0
      %v1768 = vmul.f32 %v1767, %v1662
      %v1769 = vand.u32 2147483647, %v1662
      %vm1770 = vcmp.lt.f32.partialorder %v1769, 0.0004427343
      %v1771 = vsel %vm1770, %v1768, %v1765
      %v1772 = vadd.f32 %v1664, 1.0
      %v1773 = vlog2.pop %v1772
      %v1774 = vmul.f32 %v1773, 0.6931472
      %v1775 = vmul.f32 -0.5, %v1664
      %v1776 = vadd.f32 %v1775, 1.0
      %v1777 = vmul.f32 %v1776, %v1664
      %v1778 = vand.u32 2147483647, %v1664
      %vm1779 = vcmp.lt.f32.partialorder %v1778, 0.0004427343
      %v1780 = vsel %vm1779, %v1777, %v1774
      %v1781 = vadd.f32 %v1666, 1.0
      %v1782 = vlog2.pop %v1781
      %v1783 = vmul.f32 %v1782, 0.6931472
      %v1784 = vmul.f32 -0.5, %v1666
      %v1785 = vadd.f32 %v1784, 1.0
      %v1786 = vmul.f32 %v1785, %v1666
      %v1787 = vand.u32 2147483647, %v1666
      %vm1788 = vcmp.lt.f32.partialorder %v1787, 0.0004427343
      %v1789 = vsel %vm1788, %v1786, %v1783
      %v1790 = vadd.f32 %v1668, 1.0
      %v1791 = vlog2.pop %v1790
      %v1792 = vmul.f32 %v1791, 0.6931472
      %v1793 = vmul.f32 -0.5, %v1668
      %v1794 = vadd.f32 %v1793, 1.0
      %v1795 = vmul.f32 %v1794, %v1668
      %v1796 = vand.u32 2147483647, %v1668
      %vm1797 = vcmp.lt.f32.partialorder %v1796, 0.0004427343
      %v1798 = vsel %vm1797, %v1795, %v1792
      %v1799 = vadd.f32 %v1670, 1.0
      %v1800 = vlog2.pop %v1799
      %v1801 = vmul.f32 %v1800, 0.6931472
      %v1802 = vmul.f32 -0.5, %v1670
      %v1803 = vadd.f32 %v1802, 1.0
      %v1804 = vmul.f32 %v1803, %v1670
      %v1805 = vand.u32 2147483647, %v1670
      %vm1806 = vcmp.lt.f32.partialorder %v1805, 0.0004427343
      %v1807 = vsel %vm1806, %v1804, %v1801
      %v1808 = vadd.f32 %v1672, 1.0
      %v1809 = vlog2.pop %v1808
      %v1810 = vmul.f32 %v1809, 0.6931472
      %v1811 = vmul.f32 -0.5, %v1672
      %v1812 = vadd.f32 %v1811, 1.0
      %v1813 = vmul.f32 %v1812, %v1672
      %v1814 = vand.u32 2147483647, %v1672
      %vm1815 = vcmp.lt.f32.partialorder %v1814, 0.0004427343
      %v1816 = vsel %vm1815, %v1813, %v1810
      %v1817 = vadd.f32 %v1593, %v1681
      %v1818 = vadd.f32 %v1594, %v1690
      %v1819 = vadd.f32 %v1595, %v1699
      %v1820 = vadd.f32 %v1596, %v1708
      %v1821 = vadd.f32 %v1597, %v1717
      %v1822 = vadd.f32 %v1598, %v1726
      %v1823 = vadd.f32 %v1599, %v1735
      %v1824 = vadd.f32 %v1600, %v1744
      %v1825 = vadd.f32 %v1601, %v1753
      %v1826 = vadd.f32 %v1602, %v1762
      %v1827 = vadd.f32 %v1603, %v1771
      %v1828 = vadd.f32 %v1604, %v1780
      %v1829 = vadd.f32 %v1605, %v1789
      %v1830 = vadd.f32 %v1606, %v1798
      %v1831 = vadd.f32 %v1607, %v1807
      %v1832 = vadd.f32 %v1608, %v1816
      %v1833 = vadd.f32 %v1817, 0.0001
      %v1834 = vadd.f32 %v1818, 0.0001
      %v1835 = vadd.f32 %v1819, 0.0001
      %v1836 = vadd.f32 %v1820, 0.0001
      %v1837 = vadd.f32 %v1821, 0.0001
      %v1838 = vadd.f32 %v1822, 0.0001
      %v1839 = vadd.f32 %v1823, 0.0001
      %v1840 = vadd.f32 %v1824, 0.0001
      %v1841 = vadd.f32 %v1825, 0.0001
      %v1842 = vadd.f32 %v1826, 0.0001
      %v1843 = vadd.f32 %v1827, 0.0001
      %v1844 = vadd.f32 %v1828, 0.0001
      %v1845 = vadd.f32 %v1829, 0.0001
      %v1846 = vadd.f32 %v1830, 0.0001
      %v1847 = vadd.f32 %v1831, 0.0001
      %v1848 = vadd.f32 %v1832, 0.0001
      %v1849 = vlaneseq
      %v1850 = vand.u32 %v1849, 127
      %vm1851 = vcmp.ge.s32.totalorder %v1850, 8
      %v1852 = vsel %vm1851, %v1833, %v1515
      %v1853 = vsel %vm1851, %v1834, %v1520
      %v1854 = vsel %vm1851, %v1835, %v1525
      %v1855 = vsel %vm1851, %v1836, %v1530
      %v1856 = vsel %vm1851, %v1837, %v1535
      %v1857 = vsel %vm1851, %v1838, %v1540
      %v1858 = vsel %vm1851, %v1839, %v1545
      %v1859 = vsel %vm1851, %v1840, %v1550
      %v1860 = vsel %vm1851, %v1841, %v1555
      %v1861 = vsel %vm1851, %v1842, %v1560
      %v1862 = vsel %vm1851, %v1843, %v1565
      %v1863 = vsel %vm1851, %v1844, %v1570
      %v1864 = vsel %vm1851, %v1845, %v1575
      %v1865 = vsel %vm1851, %v1846, %v1580
      %v1866 = vsel %vm1851, %v1847, %v1585
      %v1867 = vsel %vm1851, %v1848, %v1590
      %1868 = vst [vmem:[%s388] sm:$0xff] %v1852
      %1869 = vst [vmem:[%s388 + $0x8] sm:$0xff] %v1853
      %1870 = vst [vmem:[%s388 + $0x10] sm:$0xff] %v1854
      %1871 = vst [vmem:[%s388 + $0x18] sm:$0xff] %v1855
      %1872 = vst [vmem:[%s388 + $0x20] sm:$0xff] %v1856
      %1873 = vst [vmem:[%s388 + $0x28] sm:$0xff] %v1857
      %1874 = vst [vmem:[%s388 + $0x30] sm:$0xff] %v1858
      %1875 = vst [vmem:[%s388 + $0x38] sm:$0xff] %v1859
      %1876 = vst [vmem:[%s388 + $0x40] sm:$0xff] %v1860
      %1877 = vst [vmem:[%s388 + $0x48] sm:$0xff] %v1861
      %1878 = vst [vmem:[%s388 + $0x50] sm:$0xff] %v1862
      %1879 = vst [vmem:[%s388 + $0x58] sm:$0xff] %v1863
      %1880 = vst [vmem:[%s388 + $0x60] sm:$0xff] %v1864
      %1881 = vst [vmem:[%s388 + $0x68] sm:$0xff] %v1865
      %1882 = vst [vmem:[%s388 + $0x70] sm:$0xff] %v1866
      %1883 = vst [vmem:[%s388 + $0x78] sm:$0xff] %v1867
      %s1884 = smul.u32 16, %s22
      %p1885 = scmp.lt.s32.totalorder %s1884, 31
      %s1886 = scalar_select %p1885, %s1884, 31
      %s1887 = smul.addr %s1886, 8
      %s1888 = scalar_lea.vmem %s11, %s1887
      // Predicated region
      $region65: #{dense_net_pallas.1} parent=63 // pred_check
        %p1889 = pneg %p276
      $region66: #{dense_net_pallas.1} parent=63 // pred_check_branch
        %1891 = sbr.rel (%p1889) target = $region68
      $region67: #{dense_net_pallas.1} parent=63 // pred_region
        %s1892 = smul.u32 16, %s22
      $region68: #{dense_net_pallas.1} parent=63 // pred_fallthru
        _
    $region64: #{dense_net_pallas.1} parent=5 // pred_fallthru
      _
    %p1893 = scmp.le.s32.totalorder 2, %s17
    // Predicated region
    $region69: #{dense_net_pallas.1} parent=5 // pred_check
      %p1894 = pneg %p1893
    $region70: #{dense_net_pallas.1} parent=5 // pred_check_branch
      %1896 = sbr.rel (%p1894) target = $region72
    $region71: #{dense_net_pallas.1} parent=5 // pred_region
      %s1897 = ssub.s32 %s17, 2
      // Predicated region
      $region73: #{dense_net_pallas.1} parent=71 // pred_check
        %p1898 = pneg %p282
      $region74: #{dense_net_pallas.1} parent=71 // pred_check_branch
        %1900 = sbr.rel (%p1898) target = $region76
      $region75: #{dense_net_pallas.1} parent=71 // pred_region
        %s1901 = smul.u32 16, %s23
        %p1902 = scmp.lt.s32.totalorder %s1901, 31
        %s1903 = scalar_select %p1902, %s1901, 31
        %s1904 = smul.addr %s1903, 8
        %s1905 = scalar_lea.vmem %s11, %s1904
      $region76: #{dense_net_pallas.1} parent=71 // pred_fallthru
        _
    $region72: #{dense_net_pallas.1} parent=5 // pred_fallthru
      _
  $region6: #{dense_net_pallas.1} parent=0 // loop_footer
    %s21 = sadd.s32 1, %s17
  $region7: #{dense_net_pallas.1} parent=0 // loop_footer_branch
    %16 = sbr.rel target = $region3
  $region8: #{dense_net_pallas.1} parent=0 // loop_exit
    _

</llo_original>
